<compile_context>
chip_gen: v6e
topology: v6e:2x2x1
jax: 0.10.0
libtpu: 0.0.40
codegen_flags: <defaults>
</compile_context>

<pallas_src>
import functools

import jax
import jax.numpy as jnp
from jax import lax
from jax.experimental import pallas as pl
from jax.experimental.pallas import tpu as pltpu


def _round_up(x, m):
    return (x + m - 1) // m * m


def lstm_chunk_kernel(x_ref, wih_ref, bias_ref, whh_ref, wfc_ref, bfc_ref,
                      out_ref, xg_sc, h_sc, c_sc,
                      *, t_blk, bp, hp, t_total):
    """One time-chunk: in-kernel input projection + serial recurrence (+ FC).

    x_ref    : (t_blk*Bp, D)    raw input rows for this chunk (time-major)
    wih_ref  : (D, 4*Hp)        input->gates weights (padded, i/f/o scaled 0.5)
    bias_ref : (1, 4*Hp)        b_ih + b_hh          (padded, i/f/o scaled 0.5)
    whh_ref  : (Hp, 4*Hp)       hidden->gates weights(padded, i/f/o scaled 0.5)
    wfc_ref  : (Hp, Op)         final linear weights (padded, pre-transposed)
    bfc_ref  : (1, Op)          final linear bias (padded)
    out_ref  : (Bp, Op)         output (lane dense; sliced to (B, O) in wrapper)
    xg_sc    : (t_blk*Bp, 4Hp)  VMEM scratch for this chunk's pre-activations
    h_sc,c_sc: (Bp, Hp)         persistent VMEM scratch carrying LSTM state
    """
    chunk = pl.program_id(0)
    n_chunks = pl.num_programs(0)

    @pl.when(chunk == 0)
    def _():
        h_sc[...] = jnp.zeros_like(h_sc)
        c_sc[...] = jnp.zeros_like(c_sc)

    # Hoisted (per chunk) input projection: one large MXU matmul + one bias
    # broadcast; nothing time-parallel remains inside the serial loop below.
    xg_sc[...] = (
        jnp.dot(x_ref[...], wih_ref[...], preferred_element_type=jnp.float32)
        + bias_ref[...]
    )

    needs_mask = (t_total % t_blk) != 0      # static Python bool
    base = chunk * t_blk

    def step(t, carry):
        h, c = carry
        row = pl.multiple_of(t * bp, bp)     # aligned sublane-tile start
        gates = xg_sc[pl.ds(row, bp), :] + jnp.dot(
            h, whh_ref[...], preferred_element_type=jnp.float32)
        # Single EUP pass over all four gates: i/f/o pre-activations were
        # pre-scaled by 0.5, so sigmoid(x) == 0.5*(1 + tanh(x/2)) exactly.
        tg = jnp.tanh(gates)
        i_g = 0.5 * (tg[:, 0 * hp:1 * hp] + 1.0)
        f_g = 0.5 * (tg[:, 1 * hp:2 * hp] + 1.0)
        g_g = tg[:, 2 * hp:3 * hp]
        o_g = 0.5 * (tg[:, 3 * hp:4 * hp] + 1.0)
        c_new = f_g * c + i_g * g_g
        h_new = o_g * jnp.tanh(c_new)
        if needs_mask:                       # only emitted when T % t_blk != 0
            keep = (base + t) < t_total
            h_new = jnp.where(keep, h_new, h)
            c_new = jnp.where(keep, c_new, c)
        return (h_new, c_new)

    # Bounded unroll: enough lookahead to overlap the h@W_hh MXU push with the
    # VPU/EUP gate math, without full-chunk vreg pressure.
    h, c = lax.fori_loop(0, t_blk, step, (h_sc[...], c_sc[...]),
                         unroll=min(8, t_blk))
    h_sc[...] = h
    c_sc[...] = c

    @pl.when(chunk == n_chunks - 1)
    def _():
        out_ref[...] = (
            jnp.dot(h, wfc_ref[...], preferred_element_type=jnp.float32)
            + bfc_ref[...]
        ).astype(out_ref.dtype)


@functools.partial(jax.jit,
                   static_argnames=("hidden_dim", "output_dim", "time_block"))
def lstm_model_forward(x, params, *, hidden_dim, output_dim, time_block=None):
    """x: (B, T, D) batch_first, like the PyTorch module.  Returns (B, O)."""
    B, T, D = x.shape
    H, O = hidden_dim, output_dim
    Hp = _round_up(H, 128)      # lane-aligned hidden size
    Op = _round_up(O, 128)      # lane-dense output store
    Bp = _round_up(B, 8)        # sublane-aligned batch

    w_ih, w_hh, b_ih, b_hh, w_fc, b_fc = (
        params["w_ih"], params["w_hh"], params["b_ih"],
        params["b_hh"], params["w_fc"], params["b_fc"],
    )

    # Pre-scale the sigmoid gates (i, f, o) by 0.5 so the kernel can use one
    # tanh pass for all gates: sigmoid(x) == 0.5*(1 + tanh(0.5*x)).
    gate_scale = jnp.array([0.5, 0.5, 1.0, 0.5], jnp.float32)   # [i, f, g, o]

    def pad_gate_cols(w):   # (4H, X) -> (X, 4*Hp): transpose, scale, zero-pad
        x_dim = w.shape[1]
        w4 = w.reshape(4, H, x_dim).astype(jnp.float32)
        w4 = jnp.transpose(w4, (2, 0, 1)) * gate_scale[None, :, None]
        w4 = jnp.pad(w4, ((0, 0), (0, 0), (0, Hp - H)))
        return w4.reshape(x_dim, 4 * Hp)

    wih_p = pad_gate_cols(w_ih)                                     # (D, 4Hp)
    whh_p = jnp.pad(pad_gate_cols(w_hh), ((0, Hp - H), (0, 0)))     # (Hp, 4Hp)
    bias_p = jnp.pad((b_ih + b_hh).astype(jnp.float32).reshape(4, H)
                     * gate_scale[:, None],
                     ((0, 0), (0, Hp - H))).reshape(1, 4 * Hp)      # (1, 4Hp)
    wfc_p = jnp.pad(jnp.transpose(w_fc).astype(jnp.float32),
                    ((0, Hp - H), (0, Op - O)))                     # (Hp, Op)
    bfc_p = jnp.pad(b_fc.astype(jnp.float32), (0, Op - O)).reshape(1, Op)

    # ---- time chunking (padded last chunk; no divisibility requirement) ----
    if time_block is None:
        t_blk = min(T, 256)
        # keep the streamed chunk footprint (xg scratch + 2x x blocks) modest
        while (t_blk > 8 and
               4 * t_blk * Bp * (4 * Hp + 2 * _round_up(D, 128)) > (8 << 20)):
            t_blk = (t_blk + 1) // 2
    else:
        t_blk = max(1, min(int(time_block), T))
    n_chunks = (T + t_blk - 1) // t_blk
    T_pad = n_chunks * t_blk

    # ---- input prep: time-major, zero-padded batch/time, row-flattened ----
    x_tm = jnp.transpose(x, (1, 0, 2)).astype(jnp.float32)          # (T, B, D)
    x_tm = jnp.pad(x_tm, ((0, T_pad - T), (0, Bp - B), (0, 0)))     # (T_pad,Bp,D)
    x2 = x_tm.reshape(T_pad * Bp, D)

    kernel = functools.partial(lstm_chunk_kernel,
                               t_blk=t_blk, bp=Bp, hp=Hp, t_total=T)

    grid_spec = pltpu.PrefetchScalarGridSpec(
        num_scalar_prefetch=0,
        grid=(n_chunks,),
        in_specs=[
            pl.BlockSpec((t_blk * Bp, D), lambda t: (t, 0)),   # streamed x
            pl.BlockSpec((D, 4 * Hp), lambda t: (0, 0)),       # resident W_ih
            pl.BlockSpec((1, 4 * Hp), lambda t: (0, 0)),       # resident bias
            pl.BlockSpec((Hp, 4 * Hp), lambda t: (0, 0)),      # resident W_hh
            pl.BlockSpec((Hp, Op), lambda t: (0, 0)),          # resident W_fc
            pl.BlockSpec((1, Op), lambda t: (0, 0)),           # resident b_fc
        ],
        out_specs=pl.BlockSpec((Bp, Op), lambda t: (0, 0)),    # resident output
        scratch_shapes=[
            pltpu.VMEM((t_blk * Bp, 4 * Hp), jnp.float32),     # chunk xg
            pltpu.VMEM((Bp, Hp), jnp.float32),                 # h state
            pltpu.VMEM((Bp, Hp), jnp.float32),                 # c state
        ],
    )

    # ---- generation-aware VMEM budget (sublane/lane-padded block sizes) ----
    f32 = 4
    vmem_bytes = f32 * (
        2 * t_blk * Bp * _round_up(D, 128)        # double-buffered x chunks
        + 2 * _round_up(D, 8) * 4 * Hp            # W_ih  (double-buffered)
        + 2 * 8 * 4 * Hp                          # bias
        + 2 * Hp * 4 * Hp                         # W_hh
        + 2 * Hp * Op                             # W_fc
        + 2 * 8 * Op                              # b_fc
        + 2 * Bp * Op                             # output block
        + t_blk * Bp * 4 * Hp                     # xg scratch
        + 2 * Bp * Hp                             # h / c scratch
    )
    try:
        vmem_cap = int(pltpu.get_tpu_info().vmem_capacity_bytes)
    except Exception:
        vmem_cap = 64 * 1024 * 1024               # conservative v7x-sized cap
    vmem_limit = int(min(max(int(1.5 * vmem_bytes), 16 << 20),
                         int(0.75 * vmem_cap)))

    out_p = pl.pallas_call(
        kernel,
        out_shape=jax.ShapeDtypeStruct((Bp, Op), jnp.float32),
        grid_spec=grid_spec,
        compiler_params=pltpu.CompilerParams(
            dimension_semantics=("arbitrary",),   # time chunks carry h/c state
            vmem_limit_bytes=vmem_limit,
        ),
    )(x2, wih_p, bias_p, whh_p, wfc_p, bfc_p)

    return out_p[:B, :O]


def init_params(key, input_dim, hidden_dim, output_dim):
    """Deterministic init matching PyTorch nn.LSTM / nn.Linear parameter shapes."""
    H, D, O = hidden_dim, input_dim, output_dim
    k = 1.0 / jnp.sqrt(jnp.float32(H))
    keys = jax.random.split(key, 6)
    uni = lambda kk, shape, bound: jax.random.uniform(
        kk, shape, jnp.float32, -bound, bound)
    return {
        "w_ih": uni(keys[0], (4 * H, D), k),
        "w_hh": uni(keys[1], (4 * H, H), k),
        "b_ih": uni(keys[2], (4 * H,), k),
        "b_hh": uni(keys[3], (4 * H,), k),
        "w_fc": uni(keys[4], (O, H), k),
        "b_fc": uni(keys[5], (O,), k),
    }


def reference_forward(x, params, hidden_dim):
    """Pure-JAX reference (mirrors torch semantics) for a correctness check."""
    B, T, D = x.shape
    H = hidden_dim
    h = jnp.zeros((B, H), jnp.float32)
    c = jnp.zeros((B, H), jnp.float32)
    for t in range(T):
        gates = (x[:, t, :] @ params["w_ih"].T + h @ params["w_hh"].T
                 + params["b_ih"] + params["b_hh"])
        i = jax.nn.sigmoid(gates[:, 0:H])
        f = jax.nn.sigmoid(gates[:, H:2 * H])
        g = jnp.tanh(gates[:, 2 * H:3 * H])
        o = jax.nn.sigmoid(gates[:, 3 * H:4 * H])
        c = f * c + i * g
        h = o * jnp.tanh(c)
    return h @ params["w_fc"].T + params["b_fc"]


if __name__ == "__main__":
    B, T, D, H, O = 2, 8, 16, 32, 8

    key = jax.random.PRNGKey(0)
    k_x, k_x2, k_p = jax.random.split(key, 3)
    params = init_params(k_p, D, H, O)

    # Case 1: T divisible by the time chunk -> multi-chunk streamed path with
    # persistent h/c state (no last-chunk masking).
    x = jax.random.normal(k_x, (B, T, D), dtype=jnp.float32)
    out = lstm_model_forward(x, params, hidden_dim=H, output_dim=O, time_block=4)
    out = jax.block_until_ready(out)
    ref = reference_forward(x, params, H)
    assert out.shape == (B, O)
    assert jnp.allclose(out, ref, atol=1e-4, rtol=1e-4), "mismatch vs reference"

    # Case 2: T NOT divisible by the time chunk -> padded last chunk with the
    # masked-step path (replaces the old `assert T % t_blk == 0`).
    T2 = 10
    x2 = jax.random.normal(k_x2, (B, T2, D), dtype=jnp.float32)
    out2 = lstm_model_forward(x2, params, hidden_dim=H, output_dim=O,
                              time_block=4)
    out2 = jax.block_until_ready(out2)
    ref2 = reference_forward(x2, params, H)
    assert out2.shape == (B, O)
    assert jnp.allclose(out2, ref2, atol=1e-4, rtol=1e-4), "mismatch (padded chunk)"

    print("KERNEL_OK")
</pallas_src>

<mosaic_0001>
module attributes {stable_mosaic.version = 11 : i64} {
  func.func @lstm_chunk_kernel(%arg0: i32, %arg1: memref<32x16xf32, #tpu.memory_space<vmem>>, %arg2: memref<16x512xf32, #tpu.memory_space<vmem>>, %arg3: memref<1x512xf32, #tpu.memory_space<vmem>>, %arg4: memref<128x512xf32, #tpu.memory_space<vmem>>, %arg5: memref<128x128xf32, #tpu.memory_space<vmem>>, %arg6: memref<1x128xf32, #tpu.memory_space<vmem>>, %arg7: memref<8x128xf32, #tpu.memory_space<vmem>>, %arg8: memref<32x512xf32, #tpu.memory_space<vmem>>, %arg9: memref<8x128xf32, #tpu.memory_space<vmem>>, %arg10: memref<8x128xf32, #tpu.memory_space<vmem>>) attributes {dimension_semantics = [#tpu.dimension_semantics<arbitrary>], iteration_bounds = array<i64: 2>, scalar_prefetch = 0 : i64, scratch_operands = 3 : i64, tpu.core_type = #tpu.core_type<tc>, window_params = [{transform_indices = @transform_0, window_bounds = array<i64: 32, 16>}, {pipeline_mode = #tpu.pipeline_mode<synchronous>, transform_indices = @transform_1, window_bounds = array<i64: 16, 512>}, {pipeline_mode = #tpu.pipeline_mode<synchronous>, transform_indices = @transform_2, window_bounds = array<i64: 1, 512>}, {pipeline_mode = #tpu.pipeline_mode<synchronous>, transform_indices = @transform_3, window_bounds = array<i64: 128, 512>}, {pipeline_mode = #tpu.pipeline_mode<synchronous>, transform_indices = @transform_4, window_bounds = array<i64: 128, 128>}, {pipeline_mode = #tpu.pipeline_mode<synchronous>, transform_indices = @transform_5, window_bounds = array<i64: 1, 128>}, {pipeline_mode = #tpu.pipeline_mode<synchronous>, transform_indices = @transform_6, window_bounds = array<i64: 8, 128>}]} {
    %c0_i32 = arith.constant 0 : i32
    %0 = arith.cmpi eq, %arg0, %c0_i32 : i32
    %1 = arith.extui %0 : i1 to i32
    %c0_i32_0 = arith.constant 0 : i32
    %2 = arith.cmpi ne, %1, %c0_i32_0 : i32
    scf.if %2 {
      %cst_62 = arith.constant 0.000000e+00 : f32
      %133 = vector.broadcast %cst_62 : f32 to vector<8x128xf32>
      %c0_63 = arith.constant 0 : index
      %c0_64 = arith.constant 0 : index
      %134 = vector.load %arg9[%c0_63, %c0_64] : memref<8x128xf32, #tpu.memory_space<vmem>>, vector<8x128xf32>
      tpu.vector_store %arg9[%c0_63, %c0_64], %133 {strides = array<i32>} : memref<8x128xf32, #tpu.memory_space<vmem>>, vector<8x128xf32>,
      %cst_65 = arith.constant 0.000000e+00 : f32
      %135 = vector.broadcast %cst_65 : f32 to vector<8x128xf32>
      %c0_66 = arith.constant 0 : index
      %c0_67 = arith.constant 0 : index
      %136 = vector.load %arg10[%c0_66, %c0_67] : memref<8x128xf32, #tpu.memory_space<vmem>>, vector<8x128xf32>
      tpu.vector_store %arg10[%c0_66, %c0_67], %135 {strides = array<i32>} : memref<8x128xf32, #tpu.memory_space<vmem>>, vector<8x128xf32>,
    } else {
    }
    %c0 = arith.constant 0 : index
    %c0_1 = arith.constant 0 : index
    %3 = vector.load %arg1[%c0, %c0_1] : memref<32x16xf32, #tpu.memory_space<vmem>>, vector<32x16xf32>
    %c0_2 = arith.constant 0 : index
    %c0_3 = arith.constant 0 : index
    %4 = vector.load %arg2[%c0_2, %c0_3] : memref<16x512xf32, #tpu.memory_space<vmem>>, vector<16x512xf32>
    %cst = arith.constant dense<0.000000e+00> : vector<32x512xf32>
    %5 = tpu.matmul %3, %4, %cst {dimension_numbers = #tpu.dot_dimension_numbers<[1], [0], [0], [1], [0, 0, 1, 1], [], []>} : vector<32x16xf32>, vector<16x512xf32>, vector<32x512xf32> -> vector<32x512xf32>
    %c0_4 = arith.constant 0 : index
    %c0_5 = arith.constant 0 : index
    %6 = vector.load %arg3[%c0_4, %c0_5] : memref<1x512xf32, #tpu.memory_space<vmem>>, vector<1x512xf32>
    %7 = vector.broadcast %6 : vector<1x512xf32> to vector<32x512xf32>
    %8 = arith.addf %5, %7 : vector<32x512xf32>
    %c0_6 = arith.constant 0 : index
    %c0_7 = arith.constant 0 : index
    %9 = vector.load %arg8[%c0_6, %c0_7] : memref<32x512xf32, #tpu.memory_space<vmem>>, vector<32x512xf32>
    tpu.vector_store %arg8[%c0_6, %c0_7], %8 {strides = array<i32>} : memref<32x512xf32, #tpu.memory_space<vmem>>, vector<32x512xf32>,
    %c0_8 = arith.constant 0 : index
    %c0_9 = arith.constant 0 : index
    %10 = vector.load %arg9[%c0_8, %c0_9] : memref<8x128xf32, #tpu.memory_space<vmem>>, vector<8x128xf32>
    %c0_10 = arith.constant 0 : index
    %c0_11 = arith.constant 0 : index
    %11 = vector.load %arg10[%c0_10, %c0_11] : memref<8x128xf32, #tpu.memory_space<vmem>>, vector<8x128xf32>
    %c0_i32_12 = arith.constant 0 : i32
    %c8_i32 = arith.constant 8 : i32
    %12 = arith.muli %c0_i32_12, %c8_i32 : i32
    %13 = tpu.assume_multiple %12, 8 : i32
    %14 = arith.index_cast %13 : i32 to index
    %c0_13 = arith.constant 0 : index
    %15 = vector.load %arg8[%14, %c0_13] : memref<32x512xf32, #tpu.memory_space<vmem>>, vector<8x512xf32>
    %c0_14 = arith.constant 0 : index
    %c0_15 = arith.constant 0 : index
    %16 = vector.load %arg4[%c0_14, %c0_15] : memref<128x512xf32, #tpu.memory_space<vmem>>, vector<128x512xf32>
    %cst_16 = arith.constant dense<0.000000e+00> : vector<8x512xf32>
    %17 = tpu.matmul %10, %16, %cst_16 {dimension_numbers = #tpu.dot_dimension_numbers<[1], [0], [0], [1], [0, 0, 1, 1], [], []>} : vector<8x128xf32>, vector<128x512xf32>, vector<8x512xf32> -> vector<8x512xf32>
    %18 = arith.addf %15, %17 : vector<8x512xf32>
    %19 = math.tanh %18 : vector<8x512xf32>
    %20 = vector.extract_strided_slice %19 {offsets = [0, 0], sizes = [8, 128], strides = [1, 1]} : vector<8x512xf32> to vector<8x128xf32>
    %cst_17 = arith.constant 1.000000e+00 : f32
    %21 = vector.broadcast %cst_17 : f32 to vector<8x128xf32>
    %22 = arith.addf %20, %21 : vector<8x128xf32>
    %cst_18 = arith.constant 5.000000e-01 : f32
    %23 = vector.broadcast %cst_18 : f32 to vector<8x128xf32>
    %24 = arith.mulf %23, %22 : vector<8x128xf32>
    %25 = vector.extract_strided_slice %19 {offsets = [0, 128], sizes = [8, 128], strides = [1, 1]} : vector<8x512xf32> to vector<8x128xf32>
    %cst_19 = arith.constant 1.000000e+00 : f32
    %26 = vector.broadcast %cst_19 : f32 to vector<8x128xf32>
    %27 = arith.addf %25, %26 : vector<8x128xf32>
    %cst_20 = arith.constant 5.000000e-01 : f32
    %28 = vector.broadcast %cst_20 : f32 to vector<8x128xf32>
    %29 = arith.mulf %28, %27 : vector<8x128xf32>
    %30 = vector.extract_strided_slice %19 {offsets = [0, 256], sizes = [8, 128], strides = [1, 1]} : vector<8x512xf32> to vector<8x128xf32>
    %31 = vector.extract_strided_slice %19 {offsets = [0, 384], sizes = [8, 128], strides = [1, 1]} : vector<8x512xf32> to vector<8x128xf32>
    %cst_21 = arith.constant 1.000000e+00 : f32
    %32 = vector.broadcast %cst_21 : f32 to vector<8x128xf32>
    %33 = arith.addf %31, %32 : vector<8x128xf32>
    %cst_22 = arith.constant 5.000000e-01 : f32
    %34 = vector.broadcast %cst_22 : f32 to vector<8x128xf32>
    %35 = arith.mulf %34, %33 : vector<8x128xf32>
    %36 = arith.mulf %29, %11 : vector<8x128xf32>
    %37 = arith.mulf %24, %30 : vector<8x128xf32>
    %38 = arith.addf %36, %37 : vector<8x128xf32>
    %39 = math.tanh %38 : vector<8x128xf32>
    %40 = arith.mulf %35, %39 : vector<8x128xf32>
    %c1_i32 = arith.constant 1 : i32
    %c8_i32_23 = arith.constant 8 : i32
    %41 = arith.muli %c1_i32, %c8_i32_23 : i32
    %42 = tpu.assume_multiple %41, 8 : i32
    %43 = arith.index_cast %42 : i32 to index
    %c0_24 = arith.constant 0 : index
    %44 = vector.load %arg8[%43, %c0_24] : memref<32x512xf32, #tpu.memory_space<vmem>>, vector<8x512xf32>
    %c0_25 = arith.constant 0 : index
    %c0_26 = arith.constant 0 : index
    %45 = vector.load %arg4[%c0_25, %c0_26] : memref<128x512xf32, #tpu.memory_space<vmem>>, vector<128x512xf32>
    %cst_27 = arith.constant dense<0.000000e+00> : vector<8x512xf32>
    %46 = tpu.matmul %40, %45, %cst_27 {dimension_numbers = #tpu.dot_dimension_numbers<[1], [0], [0], [1], [0, 0, 1, 1], [], []>} : vector<8x128xf32>, vector<128x512xf32>, vector<8x512xf32> -> vector<8x512xf32>
    %47 = arith.addf %44, %46 : vector<8x512xf32>
    %48 = math.tanh %47 : vector<8x512xf32>
    %49 = vector.extract_strided_slice %48 {offsets = [0, 0], sizes = [8, 128], strides = [1, 1]} : vector<8x512xf32> to vector<8x128xf32>
    %cst_28 = arith.constant 1.000000e+00 : f32
    %50 = vector.broadcast %cst_28 : f32 to vector<8x128xf32>
    %51 = arith.addf %49, %50 : vector<8x128xf32>
    %cst_29 = arith.constant 5.000000e-01 : f32
    %52 = vector.broadcast %cst_29 : f32 to vector<8x128xf32>
    %53 = arith.mulf %52, %51 : vector<8x128xf32>
    %54 = vector.extract_strided_slice %48 {offsets = [0, 128], sizes = [8, 128], strides = [1, 1]} : vector<8x512xf32> to vector<8x128xf32>
    %cst_30 = arith.constant 1.000000e+00 : f32
    %55 = vector.broadcast %cst_30 : f32 to vector<8x128xf32>
    %56 = arith.addf %54, %55 : vector<8x128xf32>
    %cst_31 = arith.constant 5.000000e-01 : f32
    %57 = vector.broadcast %cst_31 : f32 to vector<8x128xf32>
    %58 = arith.mulf %57, %56 : vector<8x128xf32>
    %59 = vector.extract_strided_slice %48 {offsets = [0, 256], sizes = [8, 128], strides = [1, 1]} : vector<8x512xf32> to vector<8x128xf32>
    %60 = vector.extract_strided_slice %48 {offsets = [0, 384], sizes = [8, 128], strides = [1, 1]} : vector<8x512xf32> to vector<8x128xf32>
    %cst_32 = arith.constant 1.000000e+00 : f32
    %61 = vector.broadcast %cst_32 : f32 to vector<8x128xf32>
    %62 = arith.addf %60, %61 : vector<8x128xf32>
    %cst_33 = arith.constant 5.000000e-01 : f32
    %63 = vector.broadcast %cst_33 : f32 to vector<8x128xf32>
    %64 = arith.mulf %63, %62 : vector<8x128xf32>
    %65 = arith.mulf %58, %38 : vector<8x128xf32>
    %66 = arith.mulf %53, %59 : vector<8x128xf32>
    %67 = arith.addf %65, %66 : vector<8x128xf32>
    %68 = math.tanh %67 : vector<8x128xf32>
    %69 = arith.mulf %64, %68 : vector<8x128xf32>
    %c2_i32 = arith.constant 2 : i32
    %c8_i32_34 = arith.constant 8 : i32
    %70 = arith.muli %c2_i32, %c8_i32_34 : i32
    %71 = tpu.assume_multiple %70, 8 : i32
    %72 = arith.index_cast %71 : i32 to index
    %c0_35 = arith.constant 0 : index
    %73 = vector.load %arg8[%72, %c0_35] : memref<32x512xf32, #tpu.memory_space<vmem>>, vector<8x512xf32>
    %c0_36 = arith.constant 0 : index
    %c0_37 = arith.constant 0 : index
    %74 = vector.load %arg4[%c0_36, %c0_37] : memref<128x512xf32, #tpu.memory_space<vmem>>, vector<128x512xf32>
    %cst_38 = arith.constant dense<0.000000e+00> : vector<8x512xf32>
    %75 = tpu.matmul %69, %74, %cst_38 {dimension_numbers = #tpu.dot_dimension_numbers<[1], [0], [0], [1], [0, 0, 1, 1], [], []>} : vector<8x128xf32>, vector<128x512xf32>, vector<8x512xf32> -> vector<8x512xf32>
    %76 = arith.addf %73, %75 : vector<8x512xf32>
    %77 = math.tanh %76 : vector<8x512xf32>
    %78 = vector.extract_strided_slice %77 {offsets = [0, 0], sizes = [8, 128], strides = [1, 1]} : vector<8x512xf32> to vector<8x128xf32>
    %cst_39 = arith.constant 1.000000e+00 : f32
    %79 = vector.broadcast %cst_39 : f32 to vector<8x128xf32>
    %80 = arith.addf %78, %79 : vector<8x128xf32>
    %cst_40 = arith.constant 5.000000e-01 : f32
    %81 = vector.broadcast %cst_40 : f32 to vector<8x128xf32>
    %82 = arith.mulf %81, %80 : vector<8x128xf32>
    %83 = vector.extract_strided_slice %77 {offsets = [0, 128], sizes = [8, 128], strides = [1, 1]} : vector<8x512xf32> to vector<8x128xf32>
    %cst_41 = arith.constant 1.000000e+00 : f32
    %84 = vector.broadcast %cst_41 : f32 to vector<8x128xf32>
    %85 = arith.addf %83, %84 : vector<8x128xf32>
    %cst_42 = arith.constant 5.000000e-01 : f32
    %86 = vector.broadcast %cst_42 : f32 to vector<8x128xf32>
    %87 = arith.mulf %86, %85 : vector<8x128xf32>
    %88 = vector.extract_strided_slice %77 {offsets = [0, 256], sizes = [8, 128], strides = [1, 1]} : vector<8x512xf32> to vector<8x128xf32>
    %89 = vector.extract_strided_slice %77 {offsets = [0, 384], sizes = [8, 128], strides = [1, 1]} : vector<8x512xf32> to vector<8x128xf32>
    %cst_43 = arith.constant 1.000000e+00 : f32
    %90 = vector.broadcast %cst_43 : f32 to vector<8x128xf32>
    %91 = arith.addf %89, %90 : vector<8x128xf32>
    %cst_44 = arith.constant 5.000000e-01 : f32
    %92 = vector.broadcast %cst_44 : f32 to vector<8x128xf32>
    %93 = arith.mulf %92, %91 : vector<8x128xf32>
    %94 = arith.mulf %87, %67 : vector<8x128xf32>
    %95 = arith.mulf %82, %88 : vector<8x128xf32>
    %96 = arith.addf %94, %95 : vector<8x128xf32>
    %97 = math.tanh %96 : vector<8x128xf32>
    %98 = arith.mulf %93, %97 : vector<8x128xf32>
    %c3_i32 = arith.constant 3 : i32
    %c8_i32_45 = arith.constant 8 : i32
    %99 = arith.muli %c3_i32, %c8_i32_45 : i32
    %100 = tpu.assume_multiple %99, 8 : i32
    %101 = arith.index_cast %100 : i32 to index
    %c0_46 = arith.constant 0 : index
    %102 = vector.load %arg8[%101, %c0_46] : memref<32x512xf32, #tpu.memory_space<vmem>>, vector<8x512xf32>
    %c0_47 = arith.constant 0 : index
    %c0_48 = arith.constant 0 : index
    %103 = vector.load %arg4[%c0_47, %c0_48] : memref<128x512xf32, #tpu.memory_space<vmem>>, vector<128x512xf32>
    %cst_49 = arith.constant dense<0.000000e+00> : vector<8x512xf32>
    %104 = tpu.matmul %98, %103, %cst_49 {dimension_numbers = #tpu.dot_dimension_numbers<[1], [0], [0], [1], [0, 0, 1, 1], [], []>} : vector<8x128xf32>, vector<128x512xf32>, vector<8x512xf32> -> vector<8x512xf32>
    %105 = arith.addf %102, %104 : vector<8x512xf32>
    %106 = math.tanh %105 : vector<8x512xf32>
    %107 = vector.extract_strided_slice %106 {offsets = [0, 0], sizes = [8, 128], strides = [1, 1]} : vector<8x512xf32> to vector<8x128xf32>
    %cst_50 = arith.constant 1.000000e+00 : f32
    %108 = vector.broadcast %cst_50 : f32 to vector<8x128xf32>
    %109 = arith.addf %107, %108 : vector<8x128xf32>
    %cst_51 = arith.constant 5.000000e-01 : f32
    %110 = vector.broadcast %cst_51 : f32 to vector<8x128xf32>
    %111 = arith.mulf %110, %109 : vector<8x128xf32>
    %112 = vector.extract_strided_slice %106 {offsets = [0, 128], sizes = [8, 128], strides = [1, 1]} : vector<8x512xf32> to vector<8x128xf32>
    %cst_52 = arith.constant 1.000000e+00 : f32
    %113 = vector.broadcast %cst_52 : f32 to vector<8x128xf32>
    %114 = arith.addf %112, %113 : vector<8x128xf32>
    %cst_53 = arith.constant 5.000000e-01 : f32
    %115 = vector.broadcast %cst_53 : f32 to vector<8x128xf32>
    %116 = arith.mulf %115, %114 : vector<8x128xf32>
    %117 = vector.extract_strided_slice %106 {offsets = [0, 256], sizes = [8, 128], strides = [1, 1]} : vector<8x512xf32> to vector<8x128xf32>
    %118 = vector.extract_strided_slice %106 {offsets = [0, 384], sizes = [8, 128], strides = [1, 1]} : vector<8x512xf32> to vector<8x128xf32>
    %cst_54 = arith.constant 1.000000e+00 : f32
    %119 = vector.broadcast %cst_54 : f32 to vector<8x128xf32>
    %120 = arith.addf %118, %119 : vector<8x128xf32>
    %cst_55 = arith.constant 5.000000e-01 : f32
    %121 = vector.broadcast %cst_55 : f32 to vector<8x128xf32>
    %122 = arith.mulf %121, %120 : vector<8x128xf32>
    %123 = arith.mulf %116, %96 : vector<8x128xf32>
    %124 = arith.mulf %111, %117 : vector<8x128xf32>
    %125 = arith.addf %123, %124 : vector<8x128xf32>
    %126 = math.tanh %125 : vector<8x128xf32>
    %127 = arith.mulf %122, %126 : vector<8x128xf32>
    %c4_i32 = arith.constant 4 : i32
    %c0_56 = arith.constant 0 : index
    %c0_57 = arith.constant 0 : index
    %128 = vector.load %arg9[%c0_56, %c0_57] : memref<8x128xf32, #tpu.memory_space<vmem>>, vector<8x128xf32>
    tpu.vector_store %arg9[%c0_56, %c0_57], %127 {strides = array<i32>} : memref<8x128xf32, #tpu.memory_space<vmem>>, vector<8x128xf32>,
    %c0_58 = arith.constant 0 : index
    %c0_59 = arith.constant 0 : index
    %129 = vector.load %arg10[%c0_58, %c0_59] : memref<8x128xf32, #tpu.memory_space<vmem>>, vector<8x128xf32>
    tpu.vector_store %arg10[%c0_58, %c0_59], %125 {strides = array<i32>} : memref<8x128xf32, #tpu.memory_space<vmem>>, vector<8x128xf32>,
    %c1_i32_60 = arith.constant 1 : i32
    %130 = arith.cmpi eq, %arg0, %c1_i32_60 : i32
    %131 = arith.extui %130 : i1 to i32
    %c0_i32_61 = arith.constant 0 : i32
    %132 = arith.cmpi ne, %131, %c0_i32_61 : i32
    scf.if %132 {
      %c0_62 = arith.constant 0 : index
      %c0_63 = arith.constant 0 : index
      %133 = vector.load %arg5[%c0_62, %c0_63] : memref<128x128xf32, #tpu.memory_space<vmem>>, vector<128x128xf32>
      %cst_64 = arith.constant dense<0.000000e+00> : vector<8x128xf32>
      %134 = tpu.matmul %127, %133, %cst_64 {dimension_numbers = #tpu.dot_dimension_numbers<[1], [0], [0], [1], [0, 0, 1, 1], [], []>} : vector<8x128xf32>, vector<128x128xf32>, vector<8x128xf32> -> vector<8x128xf32>
      %c0_65 = arith.constant 0 : index
      %c0_66 = arith.constant 0 : index
      %135 = vector.load %arg6[%c0_65, %c0_66] : memref<1x128xf32, #tpu.memory_space<vmem>>, vector<1x128xf32>
      %136 = vector.broadcast %135 : vector<1x128xf32> to vector<8x128xf32>
      %137 = arith.addf %134, %136 : vector<8x128xf32>
      %c0_67 = arith.constant 0 : index
      %c0_68 = arith.constant 0 : index
      %138 = vector.load %arg7[%c0_67, %c0_68] : memref<8x128xf32, #tpu.memory_space<vmem>>, vector<8x128xf32>
      tpu.vector_store %arg7[%c0_67, %c0_68], %137 {strides = array<i32>} : memref<8x128xf32, #tpu.memory_space<vmem>>, vector<8x128xf32>,
    } else {
    }
    return
  }
  func.func @transform_0(%arg0: i32) -> (i32, i32) {
    %c0_i32 = arith.constant 0 : i32
    %c0_i32_0 = arith.constant 0 : i32
    return %arg0, %c0_i32 : i32, i32
  }
  func.func @transform_1(%arg0: i32) -> (i32, i32) {
    %c0_i32 = arith.constant 0 : i32
    %c0_i32_0 = arith.constant 0 : i32
    %c0_i32_1 = arith.constant 0 : i32
    return %c0_i32, %c0_i32_0 : i32, i32
  }
  func.func @transform_2(%arg0: i32) -> (i32, i32) {
    %c0_i32 = arith.constant 0 : i32
    %c0_i32_0 = arith.constant 0 : i32
    %c0_i32_1 = arith.constant 0 : i32
    return %c0_i32, %c0_i32_0 : i32, i32
  }
  func.func @transform_3(%arg0: i32) -> (i32, i32) {
    %c0_i32 = arith.constant 0 : i32
    %c0_i32_0 = arith.constant 0 : i32
    %c0_i32_1 = arith.constant 0 : i32
    return %c0_i32, %c0_i32_0 : i32, i32
  }
  func.func @transform_4(%arg0: i32) -> (i32, i32) {
    %c0_i32 = arith.constant 0 : i32
    %c0_i32_0 = arith.constant 0 : i32
    %c0_i32_1 = arith.constant 0 : i32
    return %c0_i32, %c0_i32_0 : i32, i32
  }
  func.func @transform_5(%arg0: i32) -> (i32, i32) {
    %c0_i32 = arith.constant 0 : i32
    %c0_i32_0 = arith.constant 0 : i32
    %c0_i32_1 = arith.constant 0 : i32
    return %c0_i32, %c0_i32_0 : i32, i32
  }
  func.func @transform_6(%arg0: i32) -> (i32, i32) {
    %c0_i32 = arith.constant 0 : i32
    %c0_i32_0 = arith.constant 0 : i32
    %c0_i32_1 = arith.constant 0 : i32
    return %c0_i32, %c0_i32_0 : i32, i32
  }
}

</mosaic_0001>

<llo_original>
// kernel: lstm_model_forward.1
$region0: #{lstm_model_forward.1}
  #allocation0 [shape = 'u32[]', space=smem, size = 0x4, offset = 0x4, fixed_abs, tag = 'smem constant byte address 0x4 - core index']
  #allocation1 [shape = 'u32[144,128]{1,0:T(1,128)}', space=vmem, size = 0x12000, scoped, tag = 'internal scratch']
  #allocation2 [shape = 'f32[32,512]{1,0:T(8,128)}', space=vmem, size = 0x10000, scoped, tag = 'scratch operand']
  #allocation3 [shape = 'f32[8,128]{1,0:T(8,128)}', space=vmem, size = 0x1000, scoped, tag = 'scratch operand']
  #allocation4 [shape = 'f32[8,128]{1,0:T(8,128)}', space=vmem, size = 0x1000, scoped, tag = 'scratch operand']
  %s0 = inlined_call_operand.vmem [shape: f32[64,16], index: 0, kind: input, shape index: {}]
  %s1 = inlined_call_operand.vmem [shape: f32[16,512], index: 1, kind: input, shape index: {}]
  %s2 = inlined_call_operand.vmem [shape: f32[1,512], index: 2, kind: input, shape index: {}]
  %s3 = inlined_call_operand.vmem [shape: f32[128,512], index: 3, kind: input, shape index: {}]
  %s4 = inlined_call_operand.vmem [shape: f32[128,128], index: 4, kind: input, shape index: {}]
  %s5 = inlined_call_operand.vmem [shape: f32[1,128], index: 5, kind: input, shape index: {}]
  %s6 = inlined_call_operand.vmem [shape: f32[8,128], index: 6, kind: output, shape index: {}]
  %s7 = sld [smem:[#allocation0]]
  $region65: #{lstm_model_forward.1} parent=0
    _
  %s9 = ssub.s32 1, %s7
  %s10 = scalar_select 0, %s9, %s7
  loop: start=0, step=1, limit=4
  $region2: #{lstm_model_forward.1} parent=0 // loop_pre_header
    _
  $region3: #{lstm_model_forward.1} parent=0 // loop_header
    %s12 = sphi 0, %s16
    %p13 = scmp.ge.s32.totalorder %s12, 4
    %s22 = sphi 0, %s24
    %s25 = sphi 0, %s22
    %s26 = sphi 0, %s25
    %s42 = sphi 0, %s26
    %s46 = sphi 0, %s46
    %s48 = sphi 0, %s46
    %s49 = sphi 0, %s48
    %s63 = sphi 0, %s49
    %s67 = sphi 0, %s67
    %s69 = sphi 0, %s67
    %s70 = sphi 0, %s69
    %s84 = sphi 0, %s70
    %s88 = sphi 0, %s88
    %s90 = sphi 0, %s88
    %s91 = sphi 0, %s90
    %s105 = sphi 0, %s91
    %s109 = sphi 0, %s109
    %s111 = sphi 0, %s109
    %s112 = sphi 0, %s111
    %s126 = sphi 0, %s112
    %s130 = sphi 0, %s130
    %s132 = sphi 0, %s130
    %s133 = sphi 0, %s132
    %s147 = sphi 0, %s133
    %s151 = sphi 0, %s151
    %s153 = sphi 0, %s151
    %s154 = sphi 0, %s153
    %s168 = sphi 0, %s154
  $region4: #{lstm_model_forward.1} parent=0 // loop_header_branch
    %15 = sbr.rel (%p13) target = $region8
  $region5: #{lstm_model_forward.1} parent=0 // loop_body
    %s17 = ssub.s32 %s12, 1
    %s18 = ssub.s32 %s12, 2
    %s19 = sadd.s32 %s12, 1
    %s20 = ssub.s32 %s12, %s19
    %p21 = scmp.eq.s32.totalorder %s20, 0
    %s23 = sadd.s32 %s22, 1
    %s24 = scalar_select %p21, %s22, %s23
    %p27 = pneg %p21
    %p28 = scmp.eq.s32.totalorder %s12, 1
    %p29 = por %p27, %p28
    %p30 = scmp.ne.s32.totalorder %s22, %s25
    %p31 = scmp.eq.s32.totalorder %s12, 0
    %p32 = por %p30, %p31
    %p33 = scmp.ne.s32.totalorder %s22, %s25
    %p34 = scmp.eq.s32.totalorder %s17, 1
    %p35 = por %p33, %p34
    %p36 = scmp.ne.s32.totalorder %s25, %s26
    %p37 = scmp.eq.s32.totalorder %s17, 0
    %p38 = por %p36, %p37
    %p39 = scmp.ne.s32.totalorder %s25, %s26
    %p40 = scmp.eq.s32.totalorder %s18, 1
    %p41 = por %p39, %p40
    %p43 = scmp.ne.s32.totalorder %s26, %s42
    %p44 = scmp.eq.s32.totalorder %s18, 0
    %p45 = por %p43, %p44
    %s47 = sadd.s32 %s46, 1
    %p50 = scmp.eq.s32.totalorder %s12, 1
    %p51 = scmp.ne.s32.totalorder %s46, %s48
    %p52 = scmp.eq.s32.totalorder %s12, 0
    %p53 = por %p51, %p52
    %p54 = scmp.ne.s32.totalorder %s46, %s48
    %p55 = scmp.eq.s32.totalorder %s17, 1
    %p56 = por %p54, %p55
    %p57 = scmp.ne.s32.totalorder %s48, %s49
    %p58 = scmp.eq.s32.totalorder %s17, 0
    %p59 = por %p57, %p58
    %p60 = scmp.ne.s32.totalorder %s48, %s49
    %p61 = scmp.eq.s32.totalorder %s18, 1
    %p62 = por %p60, %p61
    %p64 = scmp.ne.s32.totalorder %s49, %s63
    %p65 = scmp.eq.s32.totalorder %s18, 0
    %p66 = por %p64, %p65
    %s68 = sadd.s32 %s67, 1
    %p71 = scmp.eq.s32.totalorder %s12, 1
    %p72 = scmp.ne.s32.totalorder %s67, %s69
    %p73 = scmp.eq.s32.totalorder %s12, 0
    %p74 = por %p72, %p73
    %p75 = scmp.ne.s32.totalorder %s67, %s69
    %p76 = scmp.eq.s32.totalorder %s17, 1
    %p77 = por %p75, %p76
    %p78 = scmp.ne.s32.totalorder %s69, %s70
    %p79 = scmp.eq.s32.totalorder %s17, 0
    %p80 = por %p78, %p79
    %p81 = scmp.ne.s32.totalorder %s69, %s70
    %p82 = scmp.eq.s32.totalorder %s18, 1
    %p83 = por %p81, %p82
    %p85 = scmp.ne.s32.totalorder %s70, %s84
    %p86 = scmp.eq.s32.totalorder %s18, 0
    %p87 = por %p85, %p86
    %s89 = sadd.s32 %s88, 1
    %p92 = scmp.eq.s32.totalorder %s12, 1
    %p93 = scmp.ne.s32.totalorder %s88, %s90
    %p94 = scmp.eq.s32.totalorder %s12, 0
    %p95 = por %p93, %p94
    %p96 = scmp.ne.s32.totalorder %s88, %s90
    %p97 = scmp.eq.s32.totalorder %s17, 1
    %p98 = por %p96, %p97
    %p99 = scmp.ne.s32.totalorder %s90, %s91
    %p100 = scmp.eq.s32.totalorder %s17, 0
    %p101 = por %p99, %p100
    %p102 = scmp.ne.s32.totalorder %s90, %s91
    %p103 = scmp.eq.s32.totalorder %s18, 1
    %p104 = por %p102, %p103
    %p106 = scmp.ne.s32.totalorder %s91, %s105
    %p107 = scmp.eq.s32.totalorder %s18, 0
    %p108 = por %p106, %p107
    %s110 = sadd.s32 %s109, 1
    %p113 = scmp.eq.s32.totalorder %s12, 1
    %p114 = scmp.ne.s32.totalorder %s109, %s111
    %p115 = scmp.eq.s32.totalorder %s12, 0
    %p116 = por %p114, %p115
    %p117 = scmp.ne.s32.totalorder %s109, %s111
    %p118 = scmp.eq.s32.totalorder %s17, 1
    %p119 = por %p117, %p118
    %p120 = scmp.ne.s32.totalorder %s111, %s112
    %p121 = scmp.eq.s32.totalorder %s17, 0
    %p122 = por %p120, %p121
    %p123 = scmp.ne.s32.totalorder %s111, %s112
    %p124 = scmp.eq.s32.totalorder %s18, 1
    %p125 = por %p123, %p124
    %p127 = scmp.ne.s32.totalorder %s112, %s126
    %p128 = scmp.eq.s32.totalorder %s18, 0
    %p129 = por %p127, %p128
    %s131 = sadd.s32 %s130, 1
    %p134 = scmp.eq.s32.totalorder %s12, 1
    %p135 = scmp.ne.s32.totalorder %s130, %s132
    %p136 = scmp.eq.s32.totalorder %s12, 0
    %p137 = por %p135, %p136
    %p138 = scmp.ne.s32.totalorder %s130, %s132
    %p139 = scmp.eq.s32.totalorder %s17, 1
    %p140 = por %p138, %p139
    %p141 = scmp.ne.s32.totalorder %s132, %s133
    %p142 = scmp.eq.s32.totalorder %s17, 0
    %p143 = por %p141, %p142
    %p144 = scmp.ne.s32.totalorder %s132, %s133
    %p145 = scmp.eq.s32.totalorder %s18, 1
    %p146 = por %p144, %p145
    %p148 = scmp.ne.s32.totalorder %s133, %s147
    %p149 = scmp.eq.s32.totalorder %s18, 0
    %p150 = por %p148, %p149
    %s152 = sadd.s32 %s151, 1
    %p155 = scmp.eq.s32.totalorder %s12, 1
    %p156 = scmp.ne.s32.totalorder %s151, %s153
    %p157 = scmp.eq.s32.totalorder %s12, 0
    %p158 = por %p156, %p157
    %p159 = scmp.ne.s32.totalorder %s151, %s153
    %p160 = scmp.eq.s32.totalorder %s17, 1
    %p161 = por %p159, %p160
    %p162 = scmp.ne.s32.totalorder %s153, %s154
    %p163 = scmp.eq.s32.totalorder %s17, 0
    %p164 = por %p162, %p163
    %p165 = scmp.ne.s32.totalorder %s153, %s154
    %p166 = scmp.eq.s32.totalorder %s18, 1
    %p167 = por %p165, %p166
    %p169 = scmp.ne.s32.totalorder %s154, %s168
    %p170 = scmp.eq.s32.totalorder %s18, 0
    %p171 = por %p169, %p170
    %p172 = scmp.le.s32.totalorder 1, %s12
    %p173 = scmp.lt.s32.totalorder %s12, 3
    %p174 = pnand %p172, %p173
    %p175 = pneg %p174
    // Predicated region
    $region9: #{lstm_model_forward.1} parent=5 // pred_check
      _
    $region10: #{lstm_model_forward.1} parent=5 // pred_check_branch
      %177 = sbr.rel (%p174) target = $region12
    $region11: #{lstm_model_forward.1} parent=5 // pred_region
      %s178 = ssub.s32 %s12, 1
      // Predicated region
      $region13: #{lstm_model_forward.1} parent=11 // pred_check
        %p179 = pneg %p59
      $region14: #{lstm_model_forward.1} parent=11 // pred_check_branch
        %181 = sbr.rel (%p179) target = $region16
      $region15: #{lstm_model_forward.1} parent=11 // pred_region
        _
      $region16: #{lstm_model_forward.1} parent=11 // pred_fallthru
        _
      // Predicated region
      $region17: #{lstm_model_forward.1} parent=11 // pred_check
        %p182 = pneg %p80
      $region18: #{lstm_model_forward.1} parent=11 // pred_check_branch
        %184 = sbr.rel (%p182) target = $region20
      $region19: #{lstm_model_forward.1} parent=11 // pred_region
        _
      $region20: #{lstm_model_forward.1} parent=11 // pred_fallthru
        _
      // Predicated region
      $region21: #{lstm_model_forward.1} parent=11 // pred_check
        %p185 = pneg %p101
      $region22: #{lstm_model_forward.1} parent=11 // pred_check_branch
        %187 = sbr.rel (%p185) target = $region24
      $region23: #{lstm_model_forward.1} parent=11 // pred_region
        _
      $region24: #{lstm_model_forward.1} parent=11 // pred_fallthru
        _
      // Predicated region
      $region25: #{lstm_model_forward.1} parent=11 // pred_check
        %p188 = pneg %p122
      $region26: #{lstm_model_forward.1} parent=11 // pred_check_branch
        %190 = sbr.rel (%p188) target = $region28
      $region27: #{lstm_model_forward.1} parent=11 // pred_region
        _
      $region28: #{lstm_model_forward.1} parent=11 // pred_fallthru
        _
      // Predicated region
      $region29: #{lstm_model_forward.1} parent=11 // pred_check
        %p191 = pneg %p143
      $region30: #{lstm_model_forward.1} parent=11 // pred_check_branch
        %193 = sbr.rel (%p191) target = $region32
      $region31: #{lstm_model_forward.1} parent=11 // pred_region
        _
      $region32: #{lstm_model_forward.1} parent=11 // pred_fallthru
        _
    $region12: #{lstm_model_forward.1} parent=5 // pred_fallthru
      _
    %p194 = scmp.lt.s32.totalorder %s12, 2
    // Predicated region
    $region33: #{lstm_model_forward.1} parent=5 // pred_check
      %p195 = pneg %p194
    $region34: #{lstm_model_forward.1} parent=5 // pred_check_branch
      %197 = sbr.rel (%p195) target = $region36
    $region35: #{lstm_model_forward.1} parent=5 // pred_region
      // Predicated region
      $region37: #{lstm_model_forward.1} parent=35 // pred_check
        %p198 = pneg %p32
      $region38: #{lstm_model_forward.1} parent=35 // pred_check_branch
        %200 = sbr.rel (%p198) target = $region40
      $region39: #{lstm_model_forward.1} parent=35 // pred_region
        %s201 = smul.u32 4, %s12
        %p202 = scmp.lt.s32.totalorder %s201, 7
        %s203 = scalar_select %p202, %s201, 7
        %s204 = smul.addr %s203, 8
        %s205 = scalar_lea.vmem %s0, %s204
        %s206 = smul.u32 4, %s12
      $region40: #{lstm_model_forward.1} parent=35 // pred_fallthru
        _
    $region36: #{lstm_model_forward.1} parent=5 // pred_fallthru
      _
    %p207 = scmp.le.s32.totalorder 1, %s12
    %p208 = scmp.lt.s32.totalorder %s12, 3
    %p209 = pnand %p207, %p208
    %p210 = pneg %p209
    // Predicated region
    $region41: #{lstm_model_forward.1} parent=5 // pred_check
      _
    $region42: #{lstm_model_forward.1} parent=5 // pred_check_branch
      %212 = sbr.rel (%p209) target = $region44
    $region43: #{lstm_model_forward.1} parent=5 // pred_region
      %s213 = ssub.s32 %s12, 1
      %s214 = smul.u32 4, %s17
      %p215 = scmp.lt.s32.totalorder %s214, 7
      %s216 = scalar_select %p215, %s214, 7
      %s217 = smul.addr %s216, 8
      %s218 = scalar_lea.vmem %s0, %s217
      %p219 = pneg %p38
      %p220 = pneg %p35
      %p221 = pneg %p59
      %p222 = pneg %p56
      %p223 = pneg %p80
      %p224 = pneg %p77
      %p225 = pneg %p101
      %p226 = pneg %p98
      %p227 = pneg %p122
      %p228 = pneg %p119
      %p229 = pneg %p143
      %p230 = pneg %p140
      %p231 = pneg %p164
      %p232 = pneg %p161
      %s233 = smul.u32 4, %s17
      %p234 = scmp.lt.s32.totalorder %s233, 7
      %s235 = scalar_select %p234, %s233, 7
      %s236 = smul.addr %s235, 8
      %s237 = scalar_lea.vmem %s0, %s236
      %s238 = smul.u32 4, %s17
      %p239 = scmp.eq.s32.totalorder %s17, 0
      // Predicated region
      $region45: #{lstm_model_forward.1} parent=43 // pred_check
        %p240 = pneg %p239
      $region46: #{lstm_model_forward.1} parent=43 // pred_check_branch
        %242 = sbr.rel (%p240) target = $region48
      $region47: #{lstm_model_forward.1} parent=43 // pred_region
        %243 = vst [vmem:[#allocation3] sm:$0xff] 0.0
        %244 = vst [vmem:[#allocation4] sm:$0xff] 0.0
      $region48: #{lstm_model_forward.1} parent=43 // pred_fallthru
        _
      %v245 = vld [vmem:[%s237] sm:$0xff]
      %v246 = vld [vmem:[%s237 + $0x8] sm:$0xff]
      %v247 = vld [vmem:[%s237 + $0x10] sm:$0xff]
      %v248 = vld [vmem:[%s237 + $0x18] sm:$0xff]
      %v249 = vld [vmem:[%s1] sm:$0xff]
      %v250 = vld [vmem:[%s1 + $0x8] sm:$0xff]
      %v251 = vld [vmem:[%s1 + $0x10] sm:$0xff]
      %v252 = vld [vmem:[%s1 + $0x18] sm:$0xff]
      %v253 = vld [vmem:[%s1 + $0x20] sm:$0xff]
      %v254 = vld [vmem:[%s1 + $0x28] sm:$0xff]
      %v255 = vld [vmem:[%s1 + $0x30] sm:$0xff]
      %v256 = vld [vmem:[%s1 + $0x38] sm:$0xff]
      %v257 = vld [vmem:[%s2] sm:$0xf]
      %v259 = vlaneseq
      %v260 = vshrl.u32 %v259, 7
      %v261 = vsub.s32 0, %v260
      %v262 = vrot.slane %v257, %v261
      %v263 = vlaneseq
      %v264 = vshrl.u32 %v263, 7
      %v265 = vsub.s32 1, %v264
      %v266 = vrot.slane %v257, %v265
      %v267 = vlaneseq
      %v268 = vshrl.u32 %v267, 7
      %v269 = vsub.s32 2, %v268
      %v270 = vrot.slane %v257, %v269
      %v271 = vlaneseq
      %v272 = vshrl.u32 %v271, 7
      %v273 = vsub.s32 3, %v272
      %v274 = vrot.slane %v257, %v273
      %vm279 = vcmask 130048
      %v281 = vsel %vm279, %v245, 0
      %v284 = vsel %vm279, %v246, 0
      %v287 = vsel %vm279, %v247, 0
      %v290 = vsel %vm279, %v248, 0
      %292 = vmatprep.subr.mxu0 0.0
      %293 = vmatpush1.msra.mxu0 0.0
      %294 = vmatprep.subr.mxu0 0.0
      %295 = vmatpush1.msra.mxu0 0.0
      %296 = vmatprep.subr.mxu0 0.0
      %297 = vmatpush1.msra.mxu0 0.0
      %298 = vmatprep.subr.mxu0 0.0
      %299 = vmatpush1.msra.mxu0 0.0
      %300 = vmatprep.subr.mxu0 0.0
      %301 = vmatpush1.msra.mxu0 0.0
      %302 = vmatprep.subr.mxu0 0.0
      %303 = vmatpush1.msra.mxu0 0.0
      %304 = vmatprep.subr.mxu0 0.0
      %305 = vmatpush1.msra.mxu0 0.0
      %306 = vmatprep.subr.mxu0 0.0
      %307 = vmatpush1.msra.mxu0 0.0
      %308 = vmatprep.subr.mxu0 0.0
      %309 = vmatpush1.msra.mxu0 0.0
      %310 = vmatprep.subr.mxu0 0.0
      %311 = vmatpush1.msra.mxu0 0.0
      %312 = vmatprep.subr.mxu0 0.0
      %313 = vmatpush1.msra.mxu0 0.0
      %314 = vmatprep.subr.mxu0 0.0
      %315 = vmatpush1.msra.mxu0 0.0
      %316 = vmatprep.subr.mxu0 0.0
      %317 = vmatpush1.msra.mxu0 0.0
      %318 = vmatprep.subr.mxu0 0.0
      %319 = vmatpush1.msra.mxu0 0.0
      %320 = vmatprep.subr.mxu0 %v254
      %321 = vmatpush1.msra.mxu0 %v253
      %322 = vmatprep.subr.mxu0 %v250
      %323 = vmatpush1.msra.mxu0 %v249
      %324 = vmatprep.subr.mxu0 0.0
      %325 = vmatpush2.msra.mxu0 0.0
      %326 = vmatprep.subr.mxu0 0.0
      %327 = vmatpush2.msra.mxu0 0.0
      %328 = vmatprep.subr.mxu0 0.0
      %329 = vmatpush2.msra.mxu0 0.0
      %330 = vmatprep.subr.mxu0 0.0
      %331 = vmatpush2.msra.mxu0 0.0
      %332 = vmatprep.subr.mxu0 0.0
      %333 = vmatpush2.msra.mxu0 0.0
      %334 = vmatprep.subr.mxu0 0.0
      %335 = vmatpush2.msra.mxu0 0.0
      %336 = vmatprep.subr.mxu0 0.0
      %337 = vmatpush2.msra.mxu0 0.0
      %338 = vmatprep.subr.mxu0 0.0
      %339 = vmatpush2.msra.mxu0 0.0
      %340 = vmatprep.subr.mxu0 0.0
      %341 = vmatpush2.msra.mxu0 0.0
      %342 = vmatprep.subr.mxu0 0.0
      %343 = vmatpush2.msra.mxu0 0.0
      %344 = vmatprep.subr.mxu0 0.0
      %345 = vmatpush2.msra.mxu0 0.0
      %346 = vmatprep.subr.mxu0 0.0
      %347 = vmatpush2.msra.mxu0 0.0
      %348 = vmatprep.subr.mxu0 0.0
      %349 = vmatpush2.msra.mxu0 0.0
      %350 = vmatprep.subr.mxu0 0.0
      %351 = vmatpush2.msra.mxu0 0.0
      %352 = vmatprep.subr.mxu0 0.0
      %353 = vmatpush2.msra.mxu0 0.0
      %354 = vmatprep.subr.mxu0 0.0
      %355 = vmatpush2.msra.mxu0 0.0
      %356 = vmatprep.mubr.f32.mxu0 0.0
      %357 = vmatmul.mubr.f32.gmra.mxu0 %v281
      %v358 = vpop.f32.mrf.mxu0
      %v359 = vadd.f32 %v262, %v358
      %v360 = vpop.f32.mrf.mxu0
      %v361 = vadd.f32 %v266, %v360
      %362 = vmatprep.mubr.f32.mxu0 0.0
      %363 = vmatmul.mubr.f32.gmra.mxu0 %v284
      %v364 = vpop.f32.mrf.mxu0
      %v365 = vadd.f32 %v262, %v364
      %v366 = vpop.f32.mrf.mxu0
      %v367 = vadd.f32 %v266, %v366
      %368 = vmatprep.mubr.f32.mxu0 0.0
      %369 = vmatmul.mubr.f32.gmra.mxu0 %v287
      %v370 = vpop.f32.mrf.mxu0
      %v371 = vadd.f32 %v262, %v370
      %v372 = vpop.f32.mrf.mxu0
      %v373 = vadd.f32 %v266, %v372
      %374 = vmatprep.mubr.f32.mxu0 0.0
      %375 = vmatmul.mubr.f32.gmra.mxu0 %v290
      %v376 = vpop.f32.mrf.mxu0
      %v377 = vadd.f32 %v262, %v376
      %v378 = vpop.f32.mrf.mxu0
      %v379 = vadd.f32 %v266, %v378
      %380 = vdwg.mxu0
      %381 = vmatprep.subr.mxu0 0.0
      %382 = vmatpush1.msra.mxu0 0.0
      %383 = vmatprep.subr.mxu0 0.0
      %384 = vmatpush1.msra.mxu0 0.0
      %385 = vmatprep.subr.mxu0 0.0
      %386 = vmatpush1.msra.mxu0 0.0
      %387 = vmatprep.subr.mxu0 0.0
      %388 = vmatpush1.msra.mxu0 0.0
      %389 = vmatprep.subr.mxu0 0.0
      %390 = vmatpush1.msra.mxu0 0.0
      %391 = vmatprep.subr.mxu0 0.0
      %392 = vmatpush1.msra.mxu0 0.0
      %393 = vmatprep.subr.mxu0 0.0
      %394 = vmatpush1.msra.mxu0 0.0
      %395 = vmatprep.subr.mxu0 0.0
      %396 = vmatpush1.msra.mxu0 0.0
      %397 = vmatprep.subr.mxu0 0.0
      %398 = vmatpush1.msra.mxu0 0.0
      %399 = vmatprep.subr.mxu0 0.0
      %400 = vmatpush1.msra.mxu0 0.0
      %401 = vmatprep.subr.mxu0 0.0
      %402 = vmatpush1.msra.mxu0 0.0
      %403 = vmatprep.subr.mxu0 0.0
      %404 = vmatpush1.msra.mxu0 0.0
      %405 = vmatprep.subr.mxu0 0.0
      %406 = vmatpush1.msra.mxu0 0.0
      %407 = vmatprep.subr.mxu0 0.0
      %408 = vmatpush1.msra.mxu0 0.0
      %409 = vmatprep.subr.mxu0 %v256
      %410 = vmatpush1.msra.mxu0 %v255
      %411 = vmatprep.subr.mxu0 %v252
      %412 = vmatpush1.msra.mxu0 %v251
      %413 = vmatprep.subr.mxu0 0.0
      %414 = vmatpush2.msra.mxu0 0.0
      %415 = vmatprep.subr.mxu0 0.0
      %416 = vmatpush2.msra.mxu0 0.0
      %417 = vmatprep.subr.mxu0 0.0
      %418 = vmatpush2.msra.mxu0 0.0
      %419 = vmatprep.subr.mxu0 0.0
      %420 = vmatpush2.msra.mxu0 0.0
      %421 = vmatprep.subr.mxu0 0.0
      %422 = vmatpush2.msra.mxu0 0.0
      %423 = vmatprep.subr.mxu0 0.0
      %424 = vmatpush2.msra.mxu0 0.0
      %425 = vmatprep.subr.mxu0 0.0
      %426 = vmatpush2.msra.mxu0 0.0
      %427 = vmatprep.subr.mxu0 0.0
      %428 = vmatpush2.msra.mxu0 0.0
      %429 = vmatprep.subr.mxu0 0.0
      %430 = vmatpush2.msra.mxu0 0.0
      %431 = vmatprep.subr.mxu0 0.0
      %432 = vmatpush2.msra.mxu0 0.0
      %433 = vmatprep.subr.mxu0 0.0
      %434 = vmatpush2.msra.mxu0 0.0
      %435 = vmatprep.subr.mxu0 0.0
      %436 = vmatpush2.msra.mxu0 0.0
      %437 = vmatprep.subr.mxu0 0.0
      %438 = vmatpush2.msra.mxu0 0.0
      %439 = vmatprep.subr.mxu0 0.0
      %440 = vmatpush2.msra.mxu0 0.0
      %441 = vmatprep.subr.mxu0 0.0
      %442 = vmatpush2.msra.mxu0 0.0
      %443 = vmatprep.subr.mxu0 0.0
      %444 = vmatpush2.msra.mxu0 0.0
      %445 = vmatprep.mubr.f32.mxu0 0.0
      %446 = vmatmul.mubr.f32.gmra.mxu0 %v281
      %v447 = vpop.f32.mrf.mxu0
      %v448 = vadd.f32 %v270, %v447
      %v449 = vpop.f32.mrf.mxu0
      %v450 = vadd.f32 %v274, %v449
      %451 = vmatprep.mubr.f32.mxu0 0.0
      %452 = vmatmul.mubr.f32.gmra.mxu0 %v284
      %v453 = vpop.f32.mrf.mxu0
      %v454 = vadd.f32 %v270, %v453
      %v455 = vpop.f32.mrf.mxu0
      %v456 = vadd.f32 %v274, %v455
      %457 = vmatprep.mubr.f32.mxu0 0.0
      %458 = vmatmul.mubr.f32.gmra.mxu0 %v287
      %v459 = vpop.f32.mrf.mxu0
      %v460 = vadd.f32 %v270, %v459
      %v461 = vpop.f32.mrf.mxu0
      %v462 = vadd.f32 %v274, %v461
      %463 = vmatprep.mubr.f32.mxu0 0.0
      %464 = vmatmul.mubr.f32.gmra.mxu0 %v290
      %v465 = vpop.f32.mrf.mxu0
      %v466 = vadd.f32 %v270, %v465
      %v467 = vpop.f32.mrf.mxu0
      %v468 = vadd.f32 %v274, %v467
      %469 = vdwg.mxu0
      %470 = vst [vmem:[#allocation2] sm:$0xff] %v359
      %471 = vst [vmem:[#allocation2 + $0x8] sm:$0xff] %v361
      %472 = vst [vmem:[#allocation2 + $0x10] sm:$0xff] %v448
      %473 = vst [vmem:[#allocation2 + $0x18] sm:$0xff] %v450
      %474 = vst [vmem:[#allocation2 + $0x20] sm:$0xff] %v365
      %475 = vst [vmem:[#allocation2 + $0x28] sm:$0xff] %v367
      %476 = vst [vmem:[#allocation2 + $0x30] sm:$0xff] %v454
      %477 = vst [vmem:[#allocation2 + $0x38] sm:$0xff] %v456
      %478 = vst [vmem:[#allocation2 + $0x40] sm:$0xff] %v371
      %479 = vst [vmem:[#allocation2 + $0x48] sm:$0xff] %v373
      %480 = vst [vmem:[#allocation2 + $0x50] sm:$0xff] %v460
      %481 = vst [vmem:[#allocation2 + $0x58] sm:$0xff] %v462
      %482 = vst [vmem:[#allocation2 + $0x60] sm:$0xff] %v377
      %483 = vst [vmem:[#allocation2 + $0x68] sm:$0xff] %v379
      %484 = vst [vmem:[#allocation2 + $0x70] sm:$0xff] %v466
      %485 = vst [vmem:[#allocation2 + $0x78] sm:$0xff] %v468
      %v486 = vld [vmem:[#allocation3] sm:$0xff]
      %v487 = vld [vmem:[#allocation4] sm:$0xff]
      %s488 = smul.u32 0, 4
      %s489 = smul.addr %s488, 8
      %s490 = scalar_lea.vmem [#allocation2], %s489
      %v491 = vld [vmem:[%s490] sm:$0xff]
      %v492 = vld [vmem:[%s490 + $0x8] sm:$0xff]
      %v493 = vld [vmem:[%s490 + $0x10] sm:$0xff]
      %v494 = vld [vmem:[%s490 + $0x18] sm:$0xff]
      %v495 = vld [vmem:[%s3] sm:$0xff]
      %v496 = vld [vmem:[%s3 + $0x8] sm:$0xff]
      %v497 = vld [vmem:[%s3 + $0x10] sm:$0xff]
      %v498 = vld [vmem:[%s3 + $0x18] sm:$0xff]
      %v499 = vld [vmem:[%s3 + $0x20] sm:$0xff]
      %v500 = vld [vmem:[%s3 + $0x28] sm:$0xff]
      %v501 = vld [vmem:[%s3 + $0x30] sm:$0xff]
      %v502 = vld [vmem:[%s3 + $0x38] sm:$0xff]
      %v503 = vld [vmem:[%s3 + $0x40] sm:$0xff]
      %v504 = vld [vmem:[%s3 + $0x48] sm:$0xff]
      %v505 = vld [vmem:[%s3 + $0x50] sm:$0xff]
      %v506 = vld [vmem:[%s3 + $0x58] sm:$0xff]
      %v507 = vld [vmem:[%s3 + $0x60] sm:$0xff]
      %v508 = vld [vmem:[%s3 + $0x68] sm:$0xff]
      %v509 = vld [vmem:[%s3 + $0x70] sm:$0xff]
      %v510 = vld [vmem:[%s3 + $0x78] sm:$0xff]
      %v511 = vld [vmem:[%s3 + $0x80] sm:$0xff]
      %v512 = vld [vmem:[%s3 + $0x88] sm:$0xff]
      %v513 = vld [vmem:[%s3 + $0x90] sm:$0xff]
      %v514 = vld [vmem:[%s3 + $0x98] sm:$0xff]
      %v515 = vld [vmem:[%s3 + $0xa0] sm:$0xff]
      %v516 = vld [vmem:[%s3 + $0xa8] sm:$0xff]
      %v517 = vld [vmem:[%s3 + $0xb0] sm:$0xff]
      %v518 = vld [vmem:[%s3 + $0xb8] sm:$0xff]
      %v519 = vld [vmem:[%s3 + $0xc0] sm:$0xff]
      %v520 = vld [vmem:[%s3 + $0xc8] sm:$0xff]
      %v521 = vld [vmem:[%s3 + $0xd0] sm:$0xff]
      %v522 = vld [vmem:[%s3 + $0xd8] sm:$0xff]
      %v523 = vld [vmem:[%s3 + $0xe0] sm:$0xff]
      %v524 = vld [vmem:[%s3 + $0xe8] sm:$0xff]
      %v525 = vld [vmem:[%s3 + $0xf0] sm:$0xff]
      %v526 = vld [vmem:[%s3 + $0xf8] sm:$0xff]
      %v527 = vld [vmem:[%s3 + $0x100] sm:$0xff]
      %v528 = vld [vmem:[%s3 + $0x108] sm:$0xff]
      %v529 = vld [vmem:[%s3 + $0x110] sm:$0xff]
      %v530 = vld [vmem:[%s3 + $0x118] sm:$0xff]
      %v531 = vld [vmem:[%s3 + $0x120] sm:$0xff]
      %v532 = vld [vmem:[%s3 + $0x128] sm:$0xff]
      %v533 = vld [vmem:[%s3 + $0x130] sm:$0xff]
      %v534 = vld [vmem:[%s3 + $0x138] sm:$0xff]
      %v535 = vld [vmem:[%s3 + $0x140] sm:$0xff]
      %v536 = vld [vmem:[%s3 + $0x148] sm:$0xff]
      %v537 = vld [vmem:[%s3 + $0x150] sm:$0xff]
      %v538 = vld [vmem:[%s3 + $0x158] sm:$0xff]
      %v539 = vld [vmem:[%s3 + $0x160] sm:$0xff]
      %v540 = vld [vmem:[%s3 + $0x168] sm:$0xff]
      %v541 = vld [vmem:[%s3 + $0x170] sm:$0xff]
      %v542 = vld [vmem:[%s3 + $0x178] sm:$0xff]
      %v543 = vld [vmem:[%s3 + $0x180] sm:$0xff]
      %v544 = vld [vmem:[%s3 + $0x188] sm:$0xff]
      %v545 = vld [vmem:[%s3 + $0x190] sm:$0xff]
      %v546 = vld [vmem:[%s3 + $0x198] sm:$0xff]
      %v547 = vld [vmem:[%s3 + $0x1a0] sm:$0xff]
      %v548 = vld [vmem:[%s3 + $0x1a8] sm:$0xff]
      %v549 = vld [vmem:[%s3 + $0x1b0] sm:$0xff]
      %v550 = vld [vmem:[%s3 + $0x1b8] sm:$0xff]
      %v551 = vld [vmem:[%s3 + $0x1c0] sm:$0xff]
      %v552 = vld [vmem:[%s3 + $0x1c8] sm:$0xff]
      %v553 = vld [vmem:[%s3 + $0x1d0] sm:$0xff]
      %v554 = vld [vmem:[%s3 + $0x1d8] sm:$0xff]
      %v555 = vld [vmem:[%s3 + $0x1e0] sm:$0xff]
      %v556 = vld [vmem:[%s3 + $0x1e8] sm:$0xff]
      %v557 = vld [vmem:[%s3 + $0x1f0] sm:$0xff]
      %v558 = vld [vmem:[%s3 + $0x1f8] sm:$0xff]
      %559 = vmatprep.subr.mxu0 %v556
      %560 = vmatpush1.msra.mxu0 %v555
      %561 = vmatprep.subr.mxu0 %v552
      %562 = vmatpush1.msra.mxu0 %v551
      %563 = vmatprep.subr.mxu0 %v548
      %564 = vmatpush1.msra.mxu0 %v547
      %565 = vmatprep.subr.mxu0 %v544
      %566 = vmatpush1.msra.mxu0 %v543
      %567 = vmatprep.subr.mxu0 %v540
      %568 = vmatpush1.msra.mxu0 %v539
      %569 = vmatprep.subr.mxu0 %v536
      %570 = vmatpush1.msra.mxu0 %v535
      %571 = vmatprep.subr.mxu0 %v532
      %572 = vmatpush1.msra.mxu0 %v531
      %573 = vmatprep.subr.mxu0 %v528
      %574 = vmatpush1.msra.mxu0 %v527
      %575 = vmatprep.subr.mxu0 %v524
      %576 = vmatpush1.msra.mxu0 %v523
      %577 = vmatprep.subr.mxu0 %v520
      %578 = vmatpush1.msra.mxu0 %v519
      %579 = vmatprep.subr.mxu0 %v516
      %580 = vmatpush1.msra.mxu0 %v515
      %581 = vmatprep.subr.mxu0 %v512
      %582 = vmatpush1.msra.mxu0 %v511
      %583 = vmatprep.subr.mxu0 %v508
      %584 = vmatpush1.msra.mxu0 %v507
      %585 = vmatprep.subr.mxu0 %v504
      %586 = vmatpush1.msra.mxu0 %v503
      %587 = vmatprep.subr.mxu0 %v500
      %588 = vmatpush1.msra.mxu0 %v499
      %589 = vmatprep.subr.mxu0 %v496
      %590 = vmatpush1.msra.mxu0 %v495
      %591 = vmatprep.subr.mxu0 0.0
      %592 = vmatpush2.msra.mxu0 0.0
      %593 = vmatprep.subr.mxu0 0.0
      %594 = vmatpush2.msra.mxu0 0.0
      %595 = vmatprep.subr.mxu0 0.0
      %596 = vmatpush2.msra.mxu0 0.0
      %597 = vmatprep.subr.mxu0 0.0
      %598 = vmatpush2.msra.mxu0 0.0
      %599 = vmatprep.subr.mxu0 0.0
      %600 = vmatpush2.msra.mxu0 0.0
      %601 = vmatprep.subr.mxu0 0.0
      %602 = vmatpush2.msra.mxu0 0.0
      %603 = vmatprep.subr.mxu0 0.0
      %604 = vmatpush2.msra.mxu0 0.0
      %605 = vmatprep.subr.mxu0 0.0
      %606 = vmatpush2.msra.mxu0 0.0
      %607 = vmatprep.subr.mxu0 0.0
      %608 = vmatpush2.msra.mxu0 0.0
      %609 = vmatprep.subr.mxu0 0.0
      %610 = vmatpush2.msra.mxu0 0.0
      %611 = vmatprep.subr.mxu0 0.0
      %612 = vmatpush2.msra.mxu0 0.0
      %613 = vmatprep.subr.mxu0 0.0
      %614 = vmatpush2.msra.mxu0 0.0
      %615 = vmatprep.subr.mxu0 0.0
      %616 = vmatpush2.msra.mxu0 0.0
      %617 = vmatprep.subr.mxu0 0.0
      %618 = vmatpush2.msra.mxu0 0.0
      %619 = vmatprep.subr.mxu0 0.0
      %620 = vmatpush2.msra.mxu0 0.0
      %621 = vmatprep.subr.mxu0 0.0
      %622 = vmatpush2.msra.mxu0 0.0
      %623 = vmatprep.mubr.f32.mxu0 0.0
      %624 = vmatmul.mubr.f32.gmra.mxu0 %v486
      %v625 = vpop.f32.mrf.mxu0
      %v626 = vadd.f32 0.0, %v625
      %v627 = vpop.f32.mrf.mxu0
      %v628 = vadd.f32 0.0, %v627
      %629 = vdwg.mxu0
      %630 = vmatprep.subr.mxu0 %v558
      %631 = vmatpush1.msra.mxu0 %v557
      %632 = vmatprep.subr.mxu0 %v554
      %633 = vmatpush1.msra.mxu0 %v553
      %634 = vmatprep.subr.mxu0 %v550
      %635 = vmatpush1.msra.mxu0 %v549
      %636 = vmatprep.subr.mxu0 %v546
      %637 = vmatpush1.msra.mxu0 %v545
      %638 = vmatprep.subr.mxu0 %v542
      %639 = vmatpush1.msra.mxu0 %v541
      %640 = vmatprep.subr.mxu0 %v538
      %641 = vmatpush1.msra.mxu0 %v537
      %642 = vmatprep.subr.mxu0 %v534
      %643 = vmatpush1.msra.mxu0 %v533
      %644 = vmatprep.subr.mxu0 %v530
      %645 = vmatpush1.msra.mxu0 %v529
      %646 = vmatprep.subr.mxu0 %v526
      %647 = vmatpush1.msra.mxu0 %v525
      %648 = vmatprep.subr.mxu0 %v522
      %649 = vmatpush1.msra.mxu0 %v521
      %650 = vmatprep.subr.mxu0 %v518
      %651 = vmatpush1.msra.mxu0 %v517
      %652 = vmatprep.subr.mxu0 %v514
      %653 = vmatpush1.msra.mxu0 %v513
      %654 = vmatprep.subr.mxu0 %v510
      %655 = vmatpush1.msra.mxu0 %v509
      %656 = vmatprep.subr.mxu0 %v506
      %657 = vmatpush1.msra.mxu0 %v505
      %658 = vmatprep.subr.mxu0 %v502
      %659 = vmatpush1.msra.mxu0 %v501
      %660 = vmatprep.subr.mxu0 %v498
      %661 = vmatpush1.msra.mxu0 %v497
      %662 = vmatprep.subr.mxu0 0.0
      %663 = vmatpush2.msra.mxu0 0.0
      %664 = vmatprep.subr.mxu0 0.0
      %665 = vmatpush2.msra.mxu0 0.0
      %666 = vmatprep.subr.mxu0 0.0
      %667 = vmatpush2.msra.mxu0 0.0
      %668 = vmatprep.subr.mxu0 0.0
      %669 = vmatpush2.msra.mxu0 0.0
      %670 = vmatprep.subr.mxu0 0.0
      %671 = vmatpush2.msra.mxu0 0.0
      %672 = vmatprep.subr.mxu0 0.0
      %673 = vmatpush2.msra.mxu0 0.0
      %674 = vmatprep.subr.mxu0 0.0
      %675 = vmatpush2.msra.mxu0 0.0
      %676 = vmatprep.subr.mxu0 0.0
      %677 = vmatpush2.msra.mxu0 0.0
      %678 = vmatprep.subr.mxu0 0.0
      %679 = vmatpush2.msra.mxu0 0.0
      %680 = vmatprep.subr.mxu0 0.0
      %681 = vmatpush2.msra.mxu0 0.0
      %682 = vmatprep.subr.mxu0 0.0
      %683 = vmatpush2.msra.mxu0 0.0
      %684 = vmatprep.subr.mxu0 0.0
      %685 = vmatpush2.msra.mxu0 0.0
      %686 = vmatprep.subr.mxu0 0.0
      %687 = vmatpush2.msra.mxu0 0.0
      %688 = vmatprep.subr.mxu0 0.0
      %689 = vmatpush2.msra.mxu0 0.0
      %690 = vmatprep.subr.mxu0 0.0
      %691 = vmatpush2.msra.mxu0 0.0
      %692 = vmatprep.subr.mxu0 0.0
      %693 = vmatpush2.msra.mxu0 0.0
      %694 = vmatprep.mubr.f32.mxu0 0.0
      %695 = vmatmul.mubr.f32.gmra.mxu0 %v486
      %v696 = vpop.f32.mrf.mxu0
      %v697 = vadd.f32 0.0, %v696
      %v698 = vpop.f32.mrf.mxu0
      %v699 = vadd.f32 0.0, %v698
      %700 = vdwg.mxu0
      %v701 = vadd.f32 %v491, %v626
      %v702 = vadd.f32 %v492, %v628
      %v703 = vadd.f32 %v493, %v697
      %v704 = vadd.f32 %v494, %v699
      %v705 = vtanh.pop %v701
      %v706 = vtanh.pop %v702
      %v707 = vtanh.pop %v703
      %v708 = vtanh.pop %v704
      %v709 = vadd.f32 %v705, 1.0
      %v710 = vmul.f32 %v709, 0.5
      %v711 = vadd.f32 %v706, 1.0
      %v712 = vmul.f32 %v711, 0.5
      %v713 = vadd.f32 %v708, 1.0
      %v714 = vmul.f32 %v713, 0.5
      %v715 = vmul.f32 %v712, %v487
      %v716 = vmul.f32 %v710, %v707
      %v717 = vadd.f32 %v715, %v716
      %v718 = vtanh.pop %v717
      %v719 = vmul.f32 %v714, %v718
      %s720 = smul.u32 1, 4
      %s721 = smul.addr %s720, 8
      %s722 = scalar_lea.vmem [#allocation2], %s721
      %v723 = vld [vmem:[%s722] sm:$0xff]
      %v724 = vld [vmem:[%s722 + $0x8] sm:$0xff]
      %v725 = vld [vmem:[%s722 + $0x10] sm:$0xff]
      %v726 = vld [vmem:[%s722 + $0x18] sm:$0xff]
      %727 = vmatprep.subr.mxu0 %v556
      %728 = vmatpush1.msra.mxu0 %v555
      %729 = vmatprep.subr.mxu0 %v552
      %730 = vmatpush1.msra.mxu0 %v551
      %731 = vmatprep.subr.mxu0 %v548
      %732 = vmatpush1.msra.mxu0 %v547
      %733 = vmatprep.subr.mxu0 %v544
      %734 = vmatpush1.msra.mxu0 %v543
      %735 = vmatprep.subr.mxu0 %v540
      %736 = vmatpush1.msra.mxu0 %v539
      %737 = vmatprep.subr.mxu0 %v536
      %738 = vmatpush1.msra.mxu0 %v535
      %739 = vmatprep.subr.mxu0 %v532
      %740 = vmatpush1.msra.mxu0 %v531
      %741 = vmatprep.subr.mxu0 %v528
      %742 = vmatpush1.msra.mxu0 %v527
      %743 = vmatprep.subr.mxu0 %v524
      %744 = vmatpush1.msra.mxu0 %v523
      %745 = vmatprep.subr.mxu0 %v520
      %746 = vmatpush1.msra.mxu0 %v519
      %747 = vmatprep.subr.mxu0 %v516
      %748 = vmatpush1.msra.mxu0 %v515
      %749 = vmatprep.subr.mxu0 %v512
      %750 = vmatpush1.msra.mxu0 %v511
      %751 = vmatprep.subr.mxu0 %v508
      %752 = vmatpush1.msra.mxu0 %v507
      %753 = vmatprep.subr.mxu0 %v504
      %754 = vmatpush1.msra.mxu0 %v503
      %755 = vmatprep.subr.mxu0 %v500
      %756 = vmatpush1.msra.mxu0 %v499
      %757 = vmatprep.subr.mxu0 %v496
      %758 = vmatpush1.msra.mxu0 %v495
      %759 = vmatprep.subr.mxu0 0.0
      %760 = vmatpush2.msra.mxu0 0.0
      %761 = vmatprep.subr.mxu0 0.0
      %762 = vmatpush2.msra.mxu0 0.0
      %763 = vmatprep.subr.mxu0 0.0
      %764 = vmatpush2.msra.mxu0 0.0
      %765 = vmatprep.subr.mxu0 0.0
      %766 = vmatpush2.msra.mxu0 0.0
      %767 = vmatprep.subr.mxu0 0.0
      %768 = vmatpush2.msra.mxu0 0.0
      %769 = vmatprep.subr.mxu0 0.0
      %770 = vmatpush2.msra.mxu0 0.0
      %771 = vmatprep.subr.mxu0 0.0
      %772 = vmatpush2.msra.mxu0 0.0
      %773 = vmatprep.subr.mxu0 0.0
      %774 = vmatpush2.msra.mxu0 0.0
      %775 = vmatprep.subr.mxu0 0.0
      %776 = vmatpush2.msra.mxu0 0.0
      %777 = vmatprep.subr.mxu0 0.0
      %778 = vmatpush2.msra.mxu0 0.0
      %779 = vmatprep.subr.mxu0 0.0
      %780 = vmatpush2.msra.mxu0 0.0
      %781 = vmatprep.subr.mxu0 0.0
      %782 = vmatpush2.msra.mxu0 0.0
      %783 = vmatprep.subr.mxu0 0.0
      %784 = vmatpush2.msra.mxu0 0.0
      %785 = vmatprep.subr.mxu0 0.0
      %786 = vmatpush2.msra.mxu0 0.0
      %787 = vmatprep.subr.mxu0 0.0
      %788 = vmatpush2.msra.mxu0 0.0
      %789 = vmatprep.subr.mxu0 0.0
      %790 = vmatpush2.msra.mxu0 0.0
      %791 = vmatprep.mubr.f32.mxu0 0.0
      %792 = vmatmul.mubr.f32.gmra.mxu0 %v719
      %v793 = vpop.f32.mrf.mxu0
      %v794 = vadd.f32 0.0, %v793
      %v795 = vpop.f32.mrf.mxu0
      %v796 = vadd.f32 0.0, %v795
      %797 = vdwg.mxu0
      %798 = vmatprep.subr.mxu0 %v558
      %799 = vmatpush1.msra.mxu0 %v557
      %800 = vmatprep.subr.mxu0 %v554
      %801 = vmatpush1.msra.mxu0 %v553
      %802 = vmatprep.subr.mxu0 %v550
      %803 = vmatpush1.msra.mxu0 %v549
      %804 = vmatprep.subr.mxu0 %v546
      %805 = vmatpush1.msra.mxu0 %v545
      %806 = vmatprep.subr.mxu0 %v542
      %807 = vmatpush1.msra.mxu0 %v541
      %808 = vmatprep.subr.mxu0 %v538
      %809 = vmatpush1.msra.mxu0 %v537
      %810 = vmatprep.subr.mxu0 %v534
      %811 = vmatpush1.msra.mxu0 %v533
      %812 = vmatprep.subr.mxu0 %v530
      %813 = vmatpush1.msra.mxu0 %v529
      %814 = vmatprep.subr.mxu0 %v526
      %815 = vmatpush1.msra.mxu0 %v525
      %816 = vmatprep.subr.mxu0 %v522
      %817 = vmatpush1.msra.mxu0 %v521
      %818 = vmatprep.subr.mxu0 %v518
      %819 = vmatpush1.msra.mxu0 %v517
      %820 = vmatprep.subr.mxu0 %v514
      %821 = vmatpush1.msra.mxu0 %v513
      %822 = vmatprep.subr.mxu0 %v510
      %823 = vmatpush1.msra.mxu0 %v509
      %824 = vmatprep.subr.mxu0 %v506
      %825 = vmatpush1.msra.mxu0 %v505
      %826 = vmatprep.subr.mxu0 %v502
      %827 = vmatpush1.msra.mxu0 %v501
      %828 = vmatprep.subr.mxu0 %v498
      %829 = vmatpush1.msra.mxu0 %v497
      %830 = vmatprep.subr.mxu0 0.0
      %831 = vmatpush2.msra.mxu0 0.0
      %832 = vmatprep.subr.mxu0 0.0
      %833 = vmatpush2.msra.mxu0 0.0
      %834 = vmatprep.subr.mxu0 0.0
      %835 = vmatpush2.msra.mxu0 0.0
      %836 = vmatprep.subr.mxu0 0.0
      %837 = vmatpush2.msra.mxu0 0.0
      %838 = vmatprep.subr.mxu0 0.0
      %839 = vmatpush2.msra.mxu0 0.0
      %840 = vmatprep.subr.mxu0 0.0
      %841 = vmatpush2.msra.mxu0 0.0
      %842 = vmatprep.subr.mxu0 0.0
      %843 = vmatpush2.msra.mxu0 0.0
      %844 = vmatprep.subr.mxu0 0.0
      %845 = vmatpush2.msra.mxu0 0.0
      %846 = vmatprep.subr.mxu0 0.0
      %847 = vmatpush2.msra.mxu0 0.0
      %848 = vmatprep.subr.mxu0 0.0
      %849 = vmatpush2.msra.mxu0 0.0
      %850 = vmatprep.subr.mxu0 0.0
      %851 = vmatpush2.msra.mxu0 0.0
      %852 = vmatprep.subr.mxu0 0.0
      %853 = vmatpush2.msra.mxu0 0.0
      %854 = vmatprep.subr.mxu0 0.0
      %855 = vmatpush2.msra.mxu0 0.0
      %856 = vmatprep.subr.mxu0 0.0
      %857 = vmatpush2.msra.mxu0 0.0
      %858 = vmatprep.subr.mxu0 0.0
      %859 = vmatpush2.msra.mxu0 0.0
      %860 = vmatprep.subr.mxu0 0.0
      %861 = vmatpush2.msra.mxu0 0.0
      %862 = vmatprep.mubr.f32.mxu0 0.0
      %863 = vmatmul.mubr.f32.gmra.mxu0 %v719
      %v864 = vpop.f32.mrf.mxu0
      %v865 = vadd.f32 0.0, %v864
      %v866 = vpop.f32.mrf.mxu0
      %v867 = vadd.f32 0.0, %v866
      %868 = vdwg.mxu0
      %v869 = vadd.f32 %v723, %v794
      %v870 = vadd.f32 %v724, %v796
      %v871 = vadd.f32 %v725, %v865
      %v872 = vadd.f32 %v726, %v867
      %v873 = vtanh.pop %v869
      %v874 = vtanh.pop %v870
      %v875 = vtanh.pop %v871
      %v876 = vtanh.pop %v872
      %v877 = vadd.f32 %v873, 1.0
      %v878 = vmul.f32 %v877, 0.5
      %v879 = vadd.f32 %v874, 1.0
      %v880 = vmul.f32 %v879, 0.5
      %v881 = vadd.f32 %v876, 1.0
      %v882 = vmul.f32 %v881, 0.5
      %v883 = vmul.f32 %v880, %v717
      %v884 = vmul.f32 %v878, %v875
      %v885 = vadd.f32 %v883, %v884
      %v886 = vtanh.pop %v885
      %v887 = vmul.f32 %v882, %v886
      %s888 = smul.u32 2, 4
      %s889 = smul.addr %s888, 8
      %s890 = scalar_lea.vmem [#allocation2], %s889
      %v891 = vld [vmem:[%s890] sm:$0xff]
      %v892 = vld [vmem:[%s890 + $0x8] sm:$0xff]
      %v893 = vld [vmem:[%s890 + $0x10] sm:$0xff]
      %v894 = vld [vmem:[%s890 + $0x18] sm:$0xff]
      %895 = vmatprep.subr.mxu0 %v556
      %896 = vmatpush1.msra.mxu0 %v555
      %897 = vmatprep.subr.mxu0 %v552
      %898 = vmatpush1.msra.mxu0 %v551
      %899 = vmatprep.subr.mxu0 %v548
      %900 = vmatpush1.msra.mxu0 %v547
      %901 = vmatprep.subr.mxu0 %v544
      %902 = vmatpush1.msra.mxu0 %v543
      %903 = vmatprep.subr.mxu0 %v540
      %904 = vmatpush1.msra.mxu0 %v539
      %905 = vmatprep.subr.mxu0 %v536
      %906 = vmatpush1.msra.mxu0 %v535
      %907 = vmatprep.subr.mxu0 %v532
      %908 = vmatpush1.msra.mxu0 %v531
      %909 = vmatprep.subr.mxu0 %v528
      %910 = vmatpush1.msra.mxu0 %v527
      %911 = vmatprep.subr.mxu0 %v524
      %912 = vmatpush1.msra.mxu0 %v523
      %913 = vmatprep.subr.mxu0 %v520
      %914 = vmatpush1.msra.mxu0 %v519
      %915 = vmatprep.subr.mxu0 %v516
      %916 = vmatpush1.msra.mxu0 %v515
      %917 = vmatprep.subr.mxu0 %v512
      %918 = vmatpush1.msra.mxu0 %v511
      %919 = vmatprep.subr.mxu0 %v508
      %920 = vmatpush1.msra.mxu0 %v507
      %921 = vmatprep.subr.mxu0 %v504
      %922 = vmatpush1.msra.mxu0 %v503
      %923 = vmatprep.subr.mxu0 %v500
      %924 = vmatpush1.msra.mxu0 %v499
      %925 = vmatprep.subr.mxu0 %v496
      %926 = vmatpush1.msra.mxu0 %v495
      %927 = vmatprep.subr.mxu0 0.0
      %928 = vmatpush2.msra.mxu0 0.0
      %929 = vmatprep.subr.mxu0 0.0
      %930 = vmatpush2.msra.mxu0 0.0
      %931 = vmatprep.subr.mxu0 0.0
      %932 = vmatpush2.msra.mxu0 0.0
      %933 = vmatprep.subr.mxu0 0.0
      %934 = vmatpush2.msra.mxu0 0.0
      %935 = vmatprep.subr.mxu0 0.0
      %936 = vmatpush2.msra.mxu0 0.0
      %937 = vmatprep.subr.mxu0 0.0
      %938 = vmatpush2.msra.mxu0 0.0
      %939 = vmatprep.subr.mxu0 0.0
      %940 = vmatpush2.msra.mxu0 0.0
      %941 = vmatprep.subr.mxu0 0.0
      %942 = vmatpush2.msra.mxu0 0.0
      %943 = vmatprep.subr.mxu0 0.0
      %944 = vmatpush2.msra.mxu0 0.0
      %945 = vmatprep.subr.mxu0 0.0
      %946 = vmatpush2.msra.mxu0 0.0
      %947 = vmatprep.subr.mxu0 0.0
      %948 = vmatpush2.msra.mxu0 0.0
      %949 = vmatprep.subr.mxu0 0.0
      %950 = vmatpush2.msra.mxu0 0.0
      %951 = vmatprep.subr.mxu0 0.0
      %952 = vmatpush2.msra.mxu0 0.0
      %953 = vmatprep.subr.mxu0 0.0
      %954 = vmatpush2.msra.mxu0 0.0
      %955 = vmatprep.subr.mxu0 0.0
      %956 = vmatpush2.msra.mxu0 0.0
      %957 = vmatprep.subr.mxu0 0.0
      %958 = vmatpush2.msra.mxu0 0.0
      %959 = vmatprep.mubr.f32.mxu0 0.0
      %960 = vmatmul.mubr.f32.gmra.mxu0 %v887
      %v961 = vpop.f32.mrf.mxu0
      %v962 = vadd.f32 0.0, %v961
      %v963 = vpop.f32.mrf.mxu0
      %v964 = vadd.f32 0.0, %v963
      %965 = vdwg.mxu0
      %966 = vmatprep.subr.mxu0 %v558
      %967 = vmatpush1.msra.mxu0 %v557
      %968 = vmatprep.subr.mxu0 %v554
      %969 = vmatpush1.msra.mxu0 %v553
      %970 = vmatprep.subr.mxu0 %v550
      %971 = vmatpush1.msra.mxu0 %v549
      %972 = vmatprep.subr.mxu0 %v546
      %973 = vmatpush1.msra.mxu0 %v545
      %974 = vmatprep.subr.mxu0 %v542
      %975 = vmatpush1.msra.mxu0 %v541
      %976 = vmatprep.subr.mxu0 %v538
      %977 = vmatpush1.msra.mxu0 %v537
      %978 = vmatprep.subr.mxu0 %v534
      %979 = vmatpush1.msra.mxu0 %v533
      %980 = vmatprep.subr.mxu0 %v530
      %981 = vmatpush1.msra.mxu0 %v529
      %982 = vmatprep.subr.mxu0 %v526
      %983 = vmatpush1.msra.mxu0 %v525
      %984 = vmatprep.subr.mxu0 %v522
      %985 = vmatpush1.msra.mxu0 %v521
      %986 = vmatprep.subr.mxu0 %v518
      %987 = vmatpush1.msra.mxu0 %v517
      %988 = vmatprep.subr.mxu0 %v514
      %989 = vmatpush1.msra.mxu0 %v513
      %990 = vmatprep.subr.mxu0 %v510
      %991 = vmatpush1.msra.mxu0 %v509
      %992 = vmatprep.subr.mxu0 %v506
      %993 = vmatpush1.msra.mxu0 %v505
      %994 = vmatprep.subr.mxu0 %v502
      %995 = vmatpush1.msra.mxu0 %v501
      %996 = vmatprep.subr.mxu0 %v498
      %997 = vmatpush1.msra.mxu0 %v497
      %998 = vmatprep.subr.mxu0 0.0
      %999 = vmatpush2.msra.mxu0 0.0
      %1000 = vmatprep.subr.mxu0 0.0
      %1001 = vmatpush2.msra.mxu0 0.0
      %1002 = vmatprep.subr.mxu0 0.0
      %1003 = vmatpush2.msra.mxu0 0.0
      %1004 = vmatprep.subr.mxu0 0.0
      %1005 = vmatpush2.msra.mxu0 0.0
      %1006 = vmatprep.subr.mxu0 0.0
      %1007 = vmatpush2.msra.mxu0 0.0
      %1008 = vmatprep.subr.mxu0 0.0
      %1009 = vmatpush2.msra.mxu0 0.0
      %1010 = vmatprep.subr.mxu0 0.0
      %1011 = vmatpush2.msra.mxu0 0.0
      %1012 = vmatprep.subr.mxu0 0.0
      %1013 = vmatpush2.msra.mxu0 0.0
      %1014 = vmatprep.subr.mxu0 0.0
      %1015 = vmatpush2.msra.mxu0 0.0
      %1016 = vmatprep.subr.mxu0 0.0
      %1017 = vmatpush2.msra.mxu0 0.0
      %1018 = vmatprep.subr.mxu0 0.0
      %1019 = vmatpush2.msra.mxu0 0.0
      %1020 = vmatprep.subr.mxu0 0.0
      %1021 = vmatpush2.msra.mxu0 0.0
      %1022 = vmatprep.subr.mxu0 0.0
      %1023 = vmatpush2.msra.mxu0 0.0
      %1024 = vmatprep.subr.mxu0 0.0
      %1025 = vmatpush2.msra.mxu0 0.0
      %1026 = vmatprep.subr.mxu0 0.0
      %1027 = vmatpush2.msra.mxu0 0.0
      %1028 = vmatprep.subr.mxu0 0.0
      %1029 = vmatpush2.msra.mxu0 0.0
      %1030 = vmatprep.mubr.f32.mxu0 0.0
      %1031 = vmatmul.mubr.f32.gmra.mxu0 %v887
      %v1032 = vpop.f32.mrf.mxu0
      %v1033 = vadd.f32 0.0, %v1032
      %v1034 = vpop.f32.mrf.mxu0
      %v1035 = vadd.f32 0.0, %v1034
      %1036 = vdwg.mxu0
      %v1037 = vadd.f32 %v891, %v962
      %v1038 = vadd.f32 %v892, %v964
      %v1039 = vadd.f32 %v893, %v1033
      %v1040 = vadd.f32 %v894, %v1035
      %v1041 = vtanh.pop %v1037
      %v1042 = vtanh.pop %v1038
      %v1043 = vtanh.pop %v1039
      %v1044 = vtanh.pop %v1040
      %v1045 = vadd.f32 %v1041, 1.0
      %v1046 = vmul.f32 %v1045, 0.5
      %v1047 = vadd.f32 %v1042, 1.0
      %v1048 = vmul.f32 %v1047, 0.5
      %v1049 = vadd.f32 %v1044, 1.0
      %v1050 = vmul.f32 %v1049, 0.5
      %v1051 = vmul.f32 %v1048, %v885
      %v1052 = vmul.f32 %v1046, %v1043
      %v1053 = vadd.f32 %v1051, %v1052
      %v1054 = vtanh.pop %v1053
      %v1055 = vmul.f32 %v1050, %v1054
      %s1056 = smul.u32 3, 4
      %s1057 = smul.addr %s1056, 8
      %s1058 = scalar_lea.vmem [#allocation2], %s1057
      %v1059 = vld [vmem:[%s1058] sm:$0xff]
      %v1060 = vld [vmem:[%s1058 + $0x8] sm:$0xff]
      %v1061 = vld [vmem:[%s1058 + $0x10] sm:$0xff]
      %v1062 = vld [vmem:[%s1058 + $0x18] sm:$0xff]
      %1063 = vmatprep.subr.mxu0 %v556
      %1064 = vmatpush1.msra.mxu0 %v555
      %1065 = vmatprep.subr.mxu0 %v552
      %1066 = vmatpush1.msra.mxu0 %v551
      %1067 = vmatprep.subr.mxu0 %v548
      %1068 = vmatpush1.msra.mxu0 %v547
      %1069 = vmatprep.subr.mxu0 %v544
      %1070 = vmatpush1.msra.mxu0 %v543
      %1071 = vmatprep.subr.mxu0 %v540
      %1072 = vmatpush1.msra.mxu0 %v539
      %1073 = vmatprep.subr.mxu0 %v536
      %1074 = vmatpush1.msra.mxu0 %v535
      %1075 = vmatprep.subr.mxu0 %v532
      %1076 = vmatpush1.msra.mxu0 %v531
      %1077 = vmatprep.subr.mxu0 %v528
      %1078 = vmatpush1.msra.mxu0 %v527
      %1079 = vmatprep.subr.mxu0 %v524
      %1080 = vmatpush1.msra.mxu0 %v523
      %1081 = vmatprep.subr.mxu0 %v520
      %1082 = vmatpush1.msra.mxu0 %v519
      %1083 = vmatprep.subr.mxu0 %v516
      %1084 = vmatpush1.msra.mxu0 %v515
      %1085 = vmatprep.subr.mxu0 %v512
      %1086 = vmatpush1.msra.mxu0 %v511
      %1087 = vmatprep.subr.mxu0 %v508
      %1088 = vmatpush1.msra.mxu0 %v507
      %1089 = vmatprep.subr.mxu0 %v504
      %1090 = vmatpush1.msra.mxu0 %v503
      %1091 = vmatprep.subr.mxu0 %v500
      %1092 = vmatpush1.msra.mxu0 %v499
      %1093 = vmatprep.subr.mxu0 %v496
      %1094 = vmatpush1.msra.mxu0 %v495
      %1095 = vmatprep.subr.mxu0 0.0
      %1096 = vmatpush2.msra.mxu0 0.0
      %1097 = vmatprep.subr.mxu0 0.0
      %1098 = vmatpush2.msra.mxu0 0.0
      %1099 = vmatprep.subr.mxu0 0.0
      %1100 = vmatpush2.msra.mxu0 0.0
      %1101 = vmatprep.subr.mxu0 0.0
      %1102 = vmatpush2.msra.mxu0 0.0
      %1103 = vmatprep.subr.mxu0 0.0
      %1104 = vmatpush2.msra.mxu0 0.0
      %1105 = vmatprep.subr.mxu0 0.0
      %1106 = vmatpush2.msra.mxu0 0.0
      %1107 = vmatprep.subr.mxu0 0.0
      %1108 = vmatpush2.msra.mxu0 0.0
      %1109 = vmatprep.subr.mxu0 0.0
      %1110 = vmatpush2.msra.mxu0 0.0
      %1111 = vmatprep.subr.mxu0 0.0
      %1112 = vmatpush2.msra.mxu0 0.0
      %1113 = vmatprep.subr.mxu0 0.0
      %1114 = vmatpush2.msra.mxu0 0.0
      %1115 = vmatprep.subr.mxu0 0.0
      %1116 = vmatpush2.msra.mxu0 0.0
      %1117 = vmatprep.subr.mxu0 0.0
      %1118 = vmatpush2.msra.mxu0 0.0
      %1119 = vmatprep.subr.mxu0 0.0
      %1120 = vmatpush2.msra.mxu0 0.0
      %1121 = vmatprep.subr.mxu0 0.0
      %1122 = vmatpush2.msra.mxu0 0.0
      %1123 = vmatprep.subr.mxu0 0.0
      %1124 = vmatpush2.msra.mxu0 0.0
      %1125 = vmatprep.subr.mxu0 0.0
      %1126 = vmatpush2.msra.mxu0 0.0
      %1127 = vmatprep.mubr.f32.mxu0 0.0
      %1128 = vmatmul.mubr.f32.gmra.mxu0 %v1055
      %v1129 = vpop.f32.mrf.mxu0
      %v1130 = vadd.f32 0.0, %v1129
      %v1131 = vpop.f32.mrf.mxu0
      %v1132 = vadd.f32 0.0, %v1131
      %1133 = vdwg.mxu0
      %1134 = vmatprep.subr.mxu0 %v558
      %1135 = vmatpush1.msra.mxu0 %v557
      %1136 = vmatprep.subr.mxu0 %v554
      %1137 = vmatpush1.msra.mxu0 %v553
      %1138 = vmatprep.subr.mxu0 %v550
      %1139 = vmatpush1.msra.mxu0 %v549
      %1140 = vmatprep.subr.mxu0 %v546
      %1141 = vmatpush1.msra.mxu0 %v545
      %1142 = vmatprep.subr.mxu0 %v542
      %1143 = vmatpush1.msra.mxu0 %v541
      %1144 = vmatprep.subr.mxu0 %v538
      %1145 = vmatpush1.msra.mxu0 %v537
      %1146 = vmatprep.subr.mxu0 %v534
      %1147 = vmatpush1.msra.mxu0 %v533
      %1148 = vmatprep.subr.mxu0 %v530
      %1149 = vmatpush1.msra.mxu0 %v529
      %1150 = vmatprep.subr.mxu0 %v526
      %1151 = vmatpush1.msra.mxu0 %v525
      %1152 = vmatprep.subr.mxu0 %v522
      %1153 = vmatpush1.msra.mxu0 %v521
      %1154 = vmatprep.subr.mxu0 %v518
      %1155 = vmatpush1.msra.mxu0 %v517
      %1156 = vmatprep.subr.mxu0 %v514
      %1157 = vmatpush1.msra.mxu0 %v513
      %1158 = vmatprep.subr.mxu0 %v510
      %1159 = vmatpush1.msra.mxu0 %v509
      %1160 = vmatprep.subr.mxu0 %v506
      %1161 = vmatpush1.msra.mxu0 %v505
      %1162 = vmatprep.subr.mxu0 %v502
      %1163 = vmatpush1.msra.mxu0 %v501
      %1164 = vmatprep.subr.mxu0 %v498
      %1165 = vmatpush1.msra.mxu0 %v497
      %1166 = vmatprep.subr.mxu0 0.0
      %1167 = vmatpush2.msra.mxu0 0.0
      %1168 = vmatprep.subr.mxu0 0.0
      %1169 = vmatpush2.msra.mxu0 0.0
      %1170 = vmatprep.subr.mxu0 0.0
      %1171 = vmatpush2.msra.mxu0 0.0
      %1172 = vmatprep.subr.mxu0 0.0
      %1173 = vmatpush2.msra.mxu0 0.0
      %1174 = vmatprep.subr.mxu0 0.0
      %1175 = vmatpush2.msra.mxu0 0.0
      %1176 = vmatprep.subr.mxu0 0.0
      %1177 = vmatpush2.msra.mxu0 0.0
      %1178 = vmatprep.subr.mxu0 0.0
      %1179 = vmatpush2.msra.mxu0 0.0
      %1180 = vmatprep.subr.mxu0 0.0
      %1181 = vmatpush2.msra.mxu0 0.0
      %1182 = vmatprep.subr.mxu0 0.0
      %1183 = vmatpush2.msra.mxu0 0.0
      %1184 = vmatprep.subr.mxu0 0.0
      %1185 = vmatpush2.msra.mxu0 0.0
      %1186 = vmatprep.subr.mxu0 0.0
      %1187 = vmatpush2.msra.mxu0 0.0
      %1188 = vmatprep.subr.mxu0 0.0
      %1189 = vmatpush2.msra.mxu0 0.0
      %1190 = vmatprep.subr.mxu0 0.0
      %1191 = vmatpush2.msra.mxu0 0.0
      %1192 = vmatprep.subr.mxu0 0.0
      %1193 = vmatpush2.msra.mxu0 0.0
      %1194 = vmatprep.subr.mxu0 0.0
      %1195 = vmatpush2.msra.mxu0 0.0
      %1196 = vmatprep.subr.mxu0 0.0
      %1197 = vmatpush2.msra.mxu0 0.0
      %1198 = vmatprep.mubr.f32.mxu0 0.0
      %1199 = vmatmul.mubr.f32.gmra.mxu0 %v1055
      %v1200 = vpop.f32.mrf.mxu0
      %v1201 = vadd.f32 0.0, %v1200
      %v1202 = vpop.f32.mrf.mxu0
      %v1203 = vadd.f32 0.0, %v1202
      %1204 = vdwg.mxu0
      %v1205 = vadd.f32 %v1059, %v1130
      %v1206 = vadd.f32 %v1060, %v1132
      %v1207 = vadd.f32 %v1061, %v1201
      %v1208 = vadd.f32 %v1062, %v1203
      %v1209 = vtanh.pop %v1205
      %v1210 = vtanh.pop %v1206
      %v1211 = vtanh.pop %v1207
      %v1212 = vtanh.pop %v1208
      %v1213 = vadd.f32 %v1209, 1.0
      %v1214 = vmul.f32 %v1213, 0.5
      %v1215 = vadd.f32 %v1210, 1.0
      %v1216 = vmul.f32 %v1215, 0.5
      %v1217 = vadd.f32 %v1212, 1.0
      %v1218 = vmul.f32 %v1217, 0.5
      %v1219 = vmul.f32 %v1216, %v1053
      %v1220 = vmul.f32 %v1214, %v1211
      %v1221 = vadd.f32 %v1219, %v1220
      %v1222 = vtanh.pop %v1221
      %v1223 = vmul.f32 %v1218, %v1222
      %1224 = vst [vmem:[#allocation3] sm:$0xff] %v1223
      %1225 = vst [vmem:[#allocation4] sm:$0xff] %v1221
      %p1226 = scmp.eq.s32.totalorder %s17, 1
      // Predicated region
      $region49: #{lstm_model_forward.1} parent=43 // pred_check
        %p1227 = pneg %p1226
      $region50: #{lstm_model_forward.1} parent=43 // pred_check_branch
        %1229 = sbr.rel (%p1227) target = $region52
      $region51: #{lstm_model_forward.1} parent=43 // pred_region
        %v1230 = vld [vmem:[%s4] sm:$0xff]
        %v1231 = vld [vmem:[%s4 + $0x8] sm:$0xff]
        %v1232 = vld [vmem:[%s4 + $0x10] sm:$0xff]
        %v1233 = vld [vmem:[%s4 + $0x18] sm:$0xff]
        %v1234 = vld [vmem:[%s4 + $0x20] sm:$0xff]
        %v1235 = vld [vmem:[%s4 + $0x28] sm:$0xff]
        %v1236 = vld [vmem:[%s4 + $0x30] sm:$0xff]
        %v1237 = vld [vmem:[%s4 + $0x38] sm:$0xff]
        %v1238 = vld [vmem:[%s4 + $0x40] sm:$0xff]
        %v1239 = vld [vmem:[%s4 + $0x48] sm:$0xff]
        %v1240 = vld [vmem:[%s4 + $0x50] sm:$0xff]
        %v1241 = vld [vmem:[%s4 + $0x58] sm:$0xff]
        %v1242 = vld [vmem:[%s4 + $0x60] sm:$0xff]
        %v1243 = vld [vmem:[%s4 + $0x68] sm:$0xff]
        %v1244 = vld [vmem:[%s4 + $0x70] sm:$0xff]
        %v1245 = vld [vmem:[%s4 + $0x78] sm:$0xff]
        %v1246 = vld [vmem:[%s5] sm:$0x1]
        %v1248 = vlaneseq
        %v1249 = vshrl.u32 %v1248, 7
        %v1250 = vsub.s32 0, %v1249
        %v1251 = vrot.slane %v1246, %v1250
        %1253 = vmatprep.subr.mxu0 0.0
        %1254 = vmatpush1.msra.mxu0 %v1245
        %1255 = vmatprep.subr.mxu0 0.0
        %1256 = vmatpush1.msra.mxu0 %v1244
        %1257 = vmatprep.subr.mxu0 0.0
        %1258 = vmatpush1.msra.mxu0 %v1243
        %1259 = vmatprep.subr.mxu0 0.0
        %1260 = vmatpush1.msra.mxu0 %v1242
        %1261 = vmatprep.subr.mxu0 0.0
        %1262 = vmatpush1.msra.mxu0 %v1241
        %1263 = vmatprep.subr.mxu0 0.0
        %1264 = vmatpush1.msra.mxu0 %v1240
        %1265 = vmatprep.subr.mxu0 0.0
        %1266 = vmatpush1.msra.mxu0 %v1239
        %1267 = vmatprep.subr.mxu0 0.0
        %1268 = vmatpush1.msra.mxu0 %v1238
        %1269 = vmatprep.subr.mxu0 0.0
        %1270 = vmatpush1.msra.mxu0 %v1237
        %1271 = vmatprep.subr.mxu0 0.0
        %1272 = vmatpush1.msra.mxu0 %v1236
        %1273 = vmatprep.subr.mxu0 0.0
        %1274 = vmatpush1.msra.mxu0 %v1235
        %1275 = vmatprep.subr.mxu0 0.0
        %1276 = vmatpush1.msra.mxu0 %v1234
        %1277 = vmatprep.subr.mxu0 0.0
        %1278 = vmatpush1.msra.mxu0 %v1233
        %1279 = vmatprep.subr.mxu0 0.0
        %1280 = vmatpush1.msra.mxu0 %v1232
        %1281 = vmatprep.subr.mxu0 0.0
        %1282 = vmatpush1.msra.mxu0 %v1231
        %1283 = vmatprep.subr.mxu0 0.0
        %1284 = vmatpush1.msra.mxu0 %v1230
        %1285 = vmatprep.subr.mxu0 0.0
        %1286 = vmatpush2.msra.mxu0 0.0
        %1287 = vmatprep.subr.mxu0 0.0
        %1288 = vmatpush2.msra.mxu0 0.0
        %1289 = vmatprep.subr.mxu0 0.0
        %1290 = vmatpush2.msra.mxu0 0.0
        %1291 = vmatprep.subr.mxu0 0.0
        %1292 = vmatpush2.msra.mxu0 0.0
        %1293 = vmatprep.subr.mxu0 0.0
        %1294 = vmatpush2.msra.mxu0 0.0
        %1295 = vmatprep.subr.mxu0 0.0
        %1296 = vmatpush2.msra.mxu0 0.0
        %1297 = vmatprep.subr.mxu0 0.0
        %1298 = vmatpush2.msra.mxu0 0.0
        %1299 = vmatprep.subr.mxu0 0.0
        %1300 = vmatpush2.msra.mxu0 0.0
        %1301 = vmatprep.subr.mxu0 0.0
        %1302 = vmatpush2.msra.mxu0 0.0
        %1303 = vmatprep.subr.mxu0 0.0
        %1304 = vmatpush2.msra.mxu0 0.0
        %1305 = vmatprep.subr.mxu0 0.0
        %1306 = vmatpush2.msra.mxu0 0.0
        %1307 = vmatprep.subr.mxu0 0.0
        %1308 = vmatpush2.msra.mxu0 0.0
        %1309 = vmatprep.subr.mxu0 0.0
        %1310 = vmatpush2.msra.mxu0 0.0
        %1311 = vmatprep.subr.mxu0 0.0
        %1312 = vmatpush2.msra.mxu0 0.0
        %1313 = vmatprep.subr.mxu0 0.0
        %1314 = vmatpush2.msra.mxu0 0.0
        %1315 = vmatprep.subr.mxu0 0.0
        %1316 = vmatpush2.msra.mxu0 0.0
        %1317 = vmatprep.mubr.f32.mxu0 0.0
        %1318 = vmatmul.mubr.f32.gmra.mxu0 %v1223
        %v1319 = vpop.f32.mrf.mxu0
        %v1320 = vadd.f32 %v1251, %v1319
        %v1321 = vpop.f32.mrf.mxu0
        %1322 = vdwg.mxu0
        %1323 = vst [vmem:[%s6] sm:$0xff] %v1320
      $region52: #{lstm_model_forward.1} parent=43 // pred_fallthru
        _
      // Predicated region
      $region53: #{lstm_model_forward.1} parent=43 // pred_check
        %p1324 = pneg %p161
      $region54: #{lstm_model_forward.1} parent=43 // pred_check_branch
        %1326 = sbr.rel (%p1324) target = $region56
      $region55: #{lstm_model_forward.1} parent=43 // pred_region
        _
      $region56: #{lstm_model_forward.1} parent=43 // pred_fallthru
        _
      // Predicated region
      $region57: #{lstm_model_forward.1} parent=43 // pred_check
        %p1327 = pneg %p161
      $region58: #{lstm_model_forward.1} parent=43 // pred_check_branch
        %1329 = sbr.rel (%p1327) target = $region60
      $region59: #{lstm_model_forward.1} parent=43 // pred_region
        _
      $region60: #{lstm_model_forward.1} parent=43 // pred_fallthru
        _
    $region44: #{lstm_model_forward.1} parent=5 // pred_fallthru
      _
    %p1330 = scmp.le.s32.totalorder 2, %s12
    // Predicated region
    $region61: #{lstm_model_forward.1} parent=5 // pred_check
      %p1331 = pneg %p1330
    $region62: #{lstm_model_forward.1} parent=5 // pred_check_branch
      %1333 = sbr.rel (%p1331) target = $region64
    $region63: #{lstm_model_forward.1} parent=5 // pred_region
      %s1334 = ssub.s32 %s12, 2
    $region64: #{lstm_model_forward.1} parent=5 // pred_fallthru
      _
  $region6: #{lstm_model_forward.1} parent=0 // loop_footer
    %s16 = sadd.s32 1, %s12
  $region7: #{lstm_model_forward.1} parent=0 // loop_footer_branch
    %11 = sbr.rel target = $region3
  $region8: #{lstm_model_forward.1} parent=0 // loop_exit
    _

</llo_original>
